<compile_context>
chip_gen: v5e
topology: v5e:2x2
jax: 0.10.0
libtpu: 0.0.40
codegen_flags: <defaults>
</compile_context>

<pallas_src>
import functools

import jax
import jax.numpy as jnp
from jax.experimental import pallas as pl
from jax.experimental.pallas import tpu as pltpu

BN_EPS = 1e-5


# ---------------------------------------------------------------------------
# Device / sizing helpers
# ---------------------------------------------------------------------------
def _round_up(a, b):
    return ((a + b - 1) // b) * b


def _vmem_capacity_bytes():
    """Generation-aware VMEM capacity (128 MiB v5e/v6e, 64 MiB v7x)."""
    try:
        cap = getattr(pltpu.get_tpu_info(), "vmem_capacity_bytes", None)
        if cap:
            return int(cap)
    except Exception:
        pass
    return 64 << 20  # conservative default (fits v7x)


def _vmem_limit(need_bytes, cap_bytes):
    """Clamp a tile-derived VMEM budget to what this generation can give."""
    return int(min(max(need_bytes, 16 << 20), int(cap_bytes * 0.75)))


def _fits_fused(n, f, cap_bytes):
    """Can x/h1/h2/out (f32) + one bf16 activation + both bf16 weights sit in VMEM?"""
    need = 4 * n * f * 4 + n * f * 2 + 2 * (f * f * 2) + (8 << 20)
    return need <= int(cap_bytes * 0.6)


def _tiled_pass_vmem(tile_n, f):
    """Worst per-pass VMEM need of the tiled path (double-buffered streamed tiles,
    double-buffered resident bf16 weight, bf16 intermediates)."""
    pass1 = 2 * tile_n * f * 4 + 2 * f * f * 2 + 2 * tile_n * f * 2
    pass3 = 2 * tile_n * f * 4 + 2 * tile_n * f * 2 + 2 * tile_n * f * 4
    return max(pass1, pass3) + (4 << 20)


def _pick_tile_n(n, f, cap_bytes):
    """Largest batch tile that fits the generation's VMEM budget; prefer an exact
    divisor of n, otherwise the batch gets padded (and stats masked)."""
    budget = int(cap_bytes * 0.75)
    n8 = max(16, _round_up(n, 8))
    cands = [t for t in (2048, 1024, 512, 256, 128, 64, 32, 16)
             if t <= n8 and _tiled_pass_vmem(t, f) <= budget]
    if not cands:
        return 16
    for t in cands:                  # prefer no padding
        if n % t == 0:
            return t
    return cands[0]                  # largest fitting tile; caller pads the batch


# ---------------------------------------------------------------------------
# Kernels
# ---------------------------------------------------------------------------
def _fused_kernel(x_ref, w1_ref, w2_ref, g1_ref, be1_ref, g2_ref, be2_ref,
                  o_ref, *, n):
    """Whole FCResBlock in one call; every activation stays resident in VMEM."""
    inv_n = 1.0 / n
    x = x_ref[...]                                                   # (N, F) f32
    h1 = jnp.dot(x.astype(jnp.bfloat16), w1_ref[...],
                 preferred_element_type=jnp.float32)
    m1 = jnp.sum(h1, axis=0, keepdims=True) * inv_n
    v1 = jnp.maximum(jnp.sum(h1 * h1, axis=0, keepdims=True) * inv_n - m1 * m1, 0.0)
    scale1 = g1_ref[...] * jax.lax.rsqrt(v1 + BN_EPS)
    shift1 = be1_ref[...] - m1 * scale1
    a1 = jnp.maximum(h1 * scale1 + shift1, 0.0)
    h2 = jnp.dot(a1.astype(jnp.bfloat16), w2_ref[...],
                 preferred_element_type=jnp.float32)
    m2 = jnp.sum(h2, axis=0, keepdims=True) * inv_n
    v2 = jnp.maximum(jnp.sum(h2 * h2, axis=0, keepdims=True) * inv_n - m2 * m2, 0.0)
    scale2 = g2_ref[...] * jax.lax.rsqrt(v2 + BN_EPS)
    shift2 = be2_ref[...] - m2 * scale2
    o_ref[...] = jnp.maximum(x + h2 * scale2 + shift2, 0.0)


def _mm_stats_kernel(x_ref, w_ref, h_ref, sum_ref, sq_ref, *, tile_n, n_valid):
    """h = x @ W (bf16 MXU, f32 acc), stored bf16; per-tile partial sum / sum(h^2)."""
    h = jnp.dot(x_ref[...].astype(jnp.bfloat16), w_ref[...],
                preferred_element_type=jnp.float32)
    h_ref[...] = h.astype(h_ref.dtype)
    if n_valid is not None:   # mask padded batch rows out of the statistics
        row = (pl.program_id(0) * tile_n
               + jax.lax.broadcasted_iota(jnp.int32, h.shape, 0))
        h = jnp.where(row < n_valid, h, 0.0)
    sum_ref[...] = jnp.sum(h, axis=0, keepdims=True)
    sq_ref[...] = jnp.sum(h * h, axis=0, keepdims=True)


def _bn_relu_mm_stats_kernel(hpre_ref, scale_ref, shift_ref, w_ref,
                             h_ref, sum_ref, sq_ref, *, tile_n, n_valid):
    """h1 = relu(h1_pre*scale+shift); h2 = h1 @ W2 stored bf16; per-tile h2 stats."""
    h1 = jnp.maximum(
        hpre_ref[...].astype(jnp.float32) * scale_ref[...] + shift_ref[...], 0.0)
    h2 = jnp.dot(h1.astype(jnp.bfloat16), w_ref[...],
                 preferred_element_type=jnp.float32)
    h_ref[...] = h2.astype(h_ref.dtype)
    if n_valid is not None:
        row = (pl.program_id(0) * tile_n
               + jax.lax.broadcasted_iota(jnp.int32, h2.shape, 0))
        h2 = jnp.where(row < n_valid, h2, 0.0)
    sum_ref[...] = jnp.sum(h2, axis=0, keepdims=True)
    sq_ref[...] = jnp.sum(h2 * h2, axis=0, keepdims=True)


def _bn_residual_relu_kernel(x_ref, hpre_ref, scale_ref, shift_ref, o_ref):
    """out = relu(x + h2_pre*scale + shift)."""
    o_ref[...] = jnp.maximum(
        x_ref[...] + hpre_ref[...].astype(jnp.float32) * scale_ref[...]
        + shift_ref[...], 0.0)


# ---------------------------------------------------------------------------
# Host-side helpers
# ---------------------------------------------------------------------------
def _bn_scale_shift(psum, psq, n, gamma, beta):
    """Fold train-mode BN into a per-feature scale/shift from per-tile partials."""
    s = jnp.sum(psum, axis=0)                    # (grid,1,F) -> (1,F)
    q = jnp.sum(psq, axis=0)
    mean = s / n
    # TODO(synk): E[h^2]-mean^2 can lose precision if |mean| >> std; use shifted
    # sums / Welford partials if inputs carry large per-feature offsets.
    var = jnp.maximum(q / n - mean * mean, 0.0)
    scale = gamma * jax.lax.rsqrt(var + BN_EPS)
    shift = beta - mean * scale
    return scale, shift


def _fc_res_block_fused(x, w1, w2, g1, be1, g2, be2, cap_bytes):
    n, f = x.shape
    need = 4 * n * f * 4 + n * f * 2 + 2 * f * f * 2 + (8 << 20)
    return pl.pallas_call(
        functools.partial(_fused_kernel, n=n),
        out_shape=jax.ShapeDtypeStruct((n, f), jnp.float32),
        compiler_params=pltpu.CompilerParams(
            vmem_limit_bytes=_vmem_limit(need, cap_bytes)),
        cost_estimate=pl.CostEstimate(
            flops=4 * n * f * f, transcendentals=0,
            bytes_accessed=2 * n * f * 4 + 2 * f * f * 2),
    )(x, w1, w2, g1, be1, g2, be2)


def _fc_res_block_tiled(x, w1, w2, g1, be1, g2, be2, tile_n, cap_bytes):
    n, f = x.shape
    n_pad = _round_up(n, tile_n)
    padded = n_pad != n
    xp = jnp.pad(x, ((0, n_pad - n), (0, 0))) if padded else x
    grid_n = n_pad // tile_n
    grid = (grid_n,)
    n_valid = n if padded else None

    row_spec = pl.BlockSpec((tile_n, f), lambda i: (i, 0))       # streamed batch tile
    wt_spec = pl.BlockSpec((f, f), lambda i: (0, 0))             # weight stays resident
    vec_spec = pl.BlockSpec((1, f), lambda i: (0, 0))            # per-feature vectors
    part_spec = pl.BlockSpec((None, 1, f), lambda i: (i, 0, 0))  # per-tile stat partials

    row_bf16 = jax.ShapeDtypeStruct((n_pad, f), jnp.bfloat16)    # bf16 intermediates
    part_out = jax.ShapeDtypeStruct((grid_n, 1, f), jnp.float32)

    par = ("parallel",)   # partial stats -> no cross-tile carry, megacore-friendly
    mm_cost = pl.CostEstimate(flops=2 * n_pad * f * f, transcendentals=0,
                              bytes_accessed=n_pad * f * 6 + f * f * 2)

    # Pass 1: h1_pre = x @ W1 (bias dropped: cancelled by train-mode BN) + stats.
    need1 = 2 * tile_n * f * 4 + 2 * f * f * 2 + 2 * tile_n * f * 2 + (4 << 20)
    h1_pre, s1, q1 = pl.pallas_call(
        functools.partial(_mm_stats_kernel, tile_n=tile_n, n_valid=n_valid),
        grid=grid,
        in_specs=[row_spec, wt_spec],
        out_specs=[row_spec, part_spec, part_spec],
        out_shape=(row_bf16, part_out, part_out),
        compiler_params=pltpu.CompilerParams(
            dimension_semantics=par,
            vmem_limit_bytes=_vmem_limit(need1, cap_bytes)),
        cost_estimate=mm_cost,
    )(xp, w1)
    scale1, shift1 = _bn_scale_shift(s1, q1, n, g1, be1)

    # Pass 2: BN1 + ReLU, h2_pre = h1 @ W2 (bias dropped) + stats.
    need2 = 2 * tile_n * f * 2 + 2 * f * f * 2 + 2 * tile_n * f * 2 + (4 << 20)
    h2_pre, s2, q2 = pl.pallas_call(
        functools.partial(_bn_relu_mm_stats_kernel, tile_n=tile_n, n_valid=n_valid),
        grid=grid,
        in_specs=[row_spec, vec_spec, vec_spec, wt_spec],
        out_specs=[row_spec, part_spec, part_spec],
        out_shape=(row_bf16, part_out, part_out),
        compiler_params=pltpu.CompilerParams(
            dimension_semantics=par,
            vmem_limit_bytes=_vmem_limit(need2, cap_bytes)),
        cost_estimate=mm_cost,
    )(h1_pre, scale1, shift1, w2)
    scale2, shift2 = _bn_scale_shift(s2, q2, n, g2, be2)

    # Pass 3: BN2 + residual + final ReLU.
    need3 = 2 * tile_n * f * (4 + 2 + 4) + (4 << 20)
    out = pl.pallas_call(
        _bn_residual_relu_kernel,
        grid=grid,
        in_specs=[row_spec, row_spec, vec_spec, vec_spec],
        out_specs=row_spec,
        out_shape=jax.ShapeDtypeStruct((n_pad, f), jnp.float32),
        compiler_params=pltpu.CompilerParams(
            dimension_semantics=par,
            vmem_limit_bytes=_vmem_limit(need3, cap_bytes)),
        cost_estimate=pl.CostEstimate(flops=3 * n_pad * f, transcendentals=0,
                                      bytes_accessed=n_pad * f * 10),
    )(xp, h2_pre, scale2, shift2)
    return out[:n] if padded else out


def fc_res_block(x, params, tile_n=None, force_path=None):
    """x: (N, F) float32. params: dict from init_params. Returns (N, F) float32.

    force_path: None (auto), "fused" (single resident call) or "tiled" (3-pass)."""
    n, f = x.shape
    cap = _vmem_capacity_bytes()

    # bf16 weights: halves weight DMA/VMEM, 2-4x MXU throughput, f32 accumulation.
    w1 = params["w1"].astype(jnp.bfloat16)
    w2 = params["w2"].astype(jnp.bfloat16)
    g1, be1 = params["g1"], params["be1"]
    g2, be2 = params["g2"], params["be2"]
    # Linear biases are dropped: train-mode BN subtracts the batch mean, which
    # cancels a per-feature bias exactly (the f32 reference keeps them as proof).

    use_fused = (force_path == "fused"
                 or (force_path is None and _fits_fused(n, f, cap)))
    if use_fused:
        return _fc_res_block_fused(x, w1, w2, g1, be1, g2, be2, cap)

    if tile_n is None:
        tile_n = _pick_tile_n(n, f, cap)
    return _fc_res_block_tiled(x, w1, w2, g1, be1, g2, be2, tile_n, cap)


# ---------------------------------------------------------------------------
# Parameters / reference
# ---------------------------------------------------------------------------
def init_params(key, feat):
    """Synthetic parameters matching nn.Linear / nn.BatchNorm1d shapes."""
    k1, k2, k3, k4, k5, k6, k7, k8 = jax.random.split(key, 8)
    bound = 1.0 / float(feat) ** 0.5
    # PyTorch Linear weight is (out, in); we store the transpose (in, out).
    w1 = jax.random.uniform(k1, (feat, feat), jnp.float32, -bound, bound)
    b1 = jax.random.uniform(k2, (1, feat), jnp.float32, -bound, bound)
    w2 = jax.random.uniform(k3, (feat, feat), jnp.float32, -bound, bound)
    b2 = jax.random.uniform(k4, (1, feat), jnp.float32, -bound, bound)
    # Non-default affine params so the fused scale/shift path is genuinely tested.
    g1 = 1.0 + 0.1 * jax.random.normal(k5, (1, feat), jnp.float32)
    be1 = 0.1 * jax.random.normal(k6, (1, feat), jnp.float32)
    g2 = 1.0 + 0.1 * jax.random.normal(k7, (1, feat), jnp.float32)
    be2 = 0.1 * jax.random.normal(k8, (1, feat), jnp.float32)
    return {"w1": w1, "b1": b1, "w2": w2, "b2": b2,
            "g1": g1, "be1": be1, "g2": g2, "be2": be2}


def _reference(x, p):
    """Pure-JAX f32 reference of the PyTorch module (training-mode BN).

    Includes the Linear biases: train-mode BN mean subtraction cancels them, so
    matching the bias-free kernels proves the cancellation."""
    hp = jax.lax.Precision.HIGHEST
    h = jnp.dot(x, p["w1"], precision=hp) + p["b1"]
    m = h.mean(0, keepdims=True)
    v = ((h - m) ** 2).mean(0, keepdims=True)
    h = (h - m) / jnp.sqrt(v + BN_EPS) * p["g1"] + p["be1"]
    h = jnp.maximum(h, 0.0)
    h2 = jnp.dot(h, p["w2"], precision=hp) + p["b2"]
    m2 = h2.mean(0, keepdims=True)
    v2 = ((h2 - m2) ** 2).mean(0, keepdims=True)
    h2 = (h2 - m2) / jnp.sqrt(v2 + BN_EPS) * p["g2"] + p["be2"]
    return jnp.maximum(x + h2, 0.0)


if __name__ == "__main__":
    key = jax.random.PRNGKey(0)
    kx, kp = jax.random.split(key)

    N, FEAT = 256, 256          # MXU-friendly multiples; in_size == out_size
    x = jax.random.normal(kx, (N, FEAT), jnp.float32)
    params = init_params(kp, FEAT)

    run = jax.jit(fc_res_block, static_argnames=("tile_n", "force_path"))

    # 1) Fused fast path (whole block resident in VMEM) — the default for small N*F.
    out_fused = jax.block_until_ready(run(x, params, force_path="fused"))
    ref = _reference(x, params)
    assert out_fused.shape == (N, FEAT)
    err = float(jnp.max(jnp.abs(out_fused - ref)))
    assert err < 7.5e-2, f"fused max abs err {err}"          # bf16-matmul tolerance

    # 2) Tiled path, batch divides the tile (bf16 intermediates + partial BN stats).
    out_tiled = jax.block_until_ready(run(x, params, tile_n=128, force_path="tiled"))
    err = float(jnp.max(jnp.abs(out_tiled - ref)))
    assert err < 1e-1, f"tiled max abs err {err}"            # + bf16-intermediate rounding

    # 3) Tiled path with a ragged batch (exercises padding + masked statistics).
    Nr = 200
    xr = x[:Nr]
    out_r = jax.block_until_ready(run(xr, params, tile_n=128, force_path="tiled"))
    ref_r = _reference(xr, params)
    assert out_r.shape == (Nr, FEAT)
    err = float(jnp.max(jnp.abs(out_r - ref_r)))
    assert err < 1e-1, f"tiled+padded max abs err {err}"

    print("KERNEL_OK")
</pallas_src>

<mosaic_0001>
module attributes {stable_mosaic.version = 11 : i64} {
  func.func @_fused_kernel(%arg0: memref<256x256xf32, #tpu.memory_space<vmem>>, %arg1: memref<256x256xbf16, #tpu.memory_space<vmem>>, %arg2: memref<256x256xbf16, #tpu.memory_space<vmem>>, %arg3: memref<1x256xf32, #tpu.memory_space<vmem>>, %arg4: memref<1x256xf32, #tpu.memory_space<vmem>>, %arg5: memref<1x256xf32, #tpu.memory_space<vmem>>, %arg6: memref<1x256xf32, #tpu.memory_space<vmem>>, %arg7: memref<256x256xf32, #tpu.memory_space<vmem>>) attributes {dimension_semantics = [], scalar_prefetch = 0 : i64, scratch_operands = 0 : i64, tpu.core_type = #tpu.core_type<tc>} {
    %c0 = arith.constant 0 : index
    %c0_0 = arith.constant 0 : index
    %0 = vector.load %arg0[%c0, %c0_0] : memref<256x256xf32, #tpu.memory_space<vmem>>, vector<256x256xf32>
    %1 = arith.truncf %0 : vector<256x256xf32> to vector<256x256xbf16>
    %c0_1 = arith.constant 0 : index
    %c0_2 = arith.constant 0 : index
    %2 = vector.load %arg1[%c0_1, %c0_2] : memref<256x256xbf16, #tpu.memory_space<vmem>>, vector<256x256xbf16>
    %cst = arith.constant dense<0.000000e+00> : vector<256x256xf32>
    %3 = tpu.matmul %1, %2, %cst {dimension_numbers = #tpu.dot_dimension_numbers<[1], [0], [0], [1], [0, 0, 1, 1], [], []>} : vector<256x256xbf16>, vector<256x256xbf16>, vector<256x256xf32> -> vector<256x256xf32>
    %cst_3 = arith.constant dense<0.000000e+00> : vector<256xf32>
    %4 = vector.multi_reduction <add>, %3, %cst_3 [0] : vector<256x256xf32> to vector<256xf32>
    %5 = vector.shape_cast %4 : vector<256xf32> to vector<1x256xf32>
    %cst_4 = arith.constant 3.906250e-03 : f32
    %6 = vector.broadcast %cst_4 : f32 to vector<1x256xf32>
    %7 = arith.mulf %5, %6 : vector<1x256xf32>
    %8 = arith.mulf %3, %3 : vector<256x256xf32>
    %cst_5 = arith.constant dense<0.000000e+00> : vector<256xf32>
    %9 = vector.multi_reduction <add>, %8, %cst_5 [0] : vector<256x256xf32> to vector<256xf32>
    %10 = vector.shape_cast %9 : vector<256xf32> to vector<1x256xf32>
    %cst_6 = arith.constant 3.906250e-03 : f32
    %11 = vector.broadcast %cst_6 : f32 to vector<1x256xf32>
    %12 = arith.mulf %10, %11 : vector<1x256xf32>
    %13 = arith.mulf %7, %7 : vector<1x256xf32>
    %14 = arith.subf %12, %13 : vector<1x256xf32>
    %cst_7 = arith.constant 0.000000e+00 : f32
    %15 = vector.broadcast %cst_7 : f32 to vector<1x256xf32>
    %16 = arith.maximumf %14, %15 : vector<1x256xf32>
    %c0_8 = arith.constant 0 : index
    %c0_9 = arith.constant 0 : index
    %17 = vector.load %arg3[%c0_8, %c0_9] : memref<1x256xf32, #tpu.memory_space<vmem>>, vector<1x256xf32>
    %cst_10 = arith.constant 9.99999974E-6 : f32
    %18 = vector.broadcast %cst_10 : f32 to vector<1x256xf32>
    %19 = arith.addf %16, %18 : vector<1x256xf32>
    %20 = math.rsqrt %19 : vector<1x256xf32>
    %21 = arith.mulf %17, %20 : vector<1x256xf32>
    %c0_11 = arith.constant 0 : index
    %c0_12 = arith.constant 0 : index
    %22 = vector.load %arg4[%c0_11, %c0_12] : memref<1x256xf32, #tpu.memory_space<vmem>>, vector<1x256xf32>
    %23 = arith.mulf %7, %21 : vector<1x256xf32>
    %24 = arith.subf %22, %23 : vector<1x256xf32>
    %25 = vector.broadcast %21 : vector<1x256xf32> to vector<256x256xf32>
    %26 = arith.mulf %3, %25 : vector<256x256xf32>
    %27 = vector.broadcast %24 : vector<1x256xf32> to vector<256x256xf32>
    %28 = arith.addf %26, %27 : vector<256x256xf32>
    %cst_13 = arith.constant 0.000000e+00 : f32
    %29 = vector.broadcast %cst_13 : f32 to vector<256x256xf32>
    %30 = arith.maximumf %28, %29 : vector<256x256xf32>
    %31 = arith.truncf %30 : vector<256x256xf32> to vector<256x256xbf16>
    %c0_14 = arith.constant 0 : index
    %c0_15 = arith.constant 0 : index
    %32 = vector.load %arg2[%c0_14, %c0_15] : memref<256x256xbf16, #tpu.memory_space<vmem>>, vector<256x256xbf16>
    %cst_16 = arith.constant dense<0.000000e+00> : vector<256x256xf32>
    %33 = tpu.matmul %31, %32, %cst_16 {dimension_numbers = #tpu.dot_dimension_numbers<[1], [0], [0], [1], [0, 0, 1, 1], [], []>} : vector<256x256xbf16>, vector<256x256xbf16>, vector<256x256xf32> -> vector<256x256xf32>
    %cst_17 = arith.constant dense<0.000000e+00> : vector<256xf32>
    %34 = vector.multi_reduction <add>, %33, %cst_17 [0] : vector<256x256xf32> to vector<256xf32>
    %35 = vector.shape_cast %34 : vector<256xf32> to vector<1x256xf32>
    %cst_18 = arith.constant 3.906250e-03 : f32
    %36 = vector.broadcast %cst_18 : f32 to vector<1x256xf32>
    %37 = arith.mulf %35, %36 : vector<1x256xf32>
    %38 = arith.mulf %33, %33 : vector<256x256xf32>
    %cst_19 = arith.constant dense<0.000000e+00> : vector<256xf32>
    %39 = vector.multi_reduction <add>, %38, %cst_19 [0] : vector<256x256xf32> to vector<256xf32>
    %40 = vector.shape_cast %39 : vector<256xf32> to vector<1x256xf32>
    %cst_20 = arith.constant 3.906250e-03 : f32
    %41 = vector.broadcast %cst_20 : f32 to vector<1x256xf32>
    %42 = arith.mulf %40, %41 : vector<1x256xf32>
    %43 = arith.mulf %37, %37 : vector<1x256xf32>
    %44 = arith.subf %42, %43 : vector<1x256xf32>
    %cst_21 = arith.constant 0.000000e+00 : f32
    %45 = vector.broadcast %cst_21 : f32 to vector<1x256xf32>
    %46 = arith.maximumf %44, %45 : vector<1x256xf32>
    %c0_22 = arith.constant 0 : index
    %c0_23 = arith.constant 0 : index
    %47 = vector.load %arg5[%c0_22, %c0_23] : memref<1x256xf32, #tpu.memory_space<vmem>>, vector<1x256xf32>
    %cst_24 = arith.constant 9.99999974E-6 : f32
    %48 = vector.broadcast %cst_24 : f32 to vector<1x256xf32>
    %49 = arith.addf %46, %48 : vector<1x256xf32>
    %50 = math.rsqrt %49 : vector<1x256xf32>
    %51 = arith.mulf %47, %50 : vector<1x256xf32>
    %c0_25 = arith.constant 0 : index
    %c0_26 = arith.constant 0 : index
    %52 = vector.load %arg6[%c0_25, %c0_26] : memref<1x256xf32, #tpu.memory_space<vmem>>, vector<1x256xf32>
    %53 = arith.mulf %37, %51 : vector<1x256xf32>
    %54 = arith.subf %52, %53 : vector<1x256xf32>
    %55 = vector.broadcast %51 : vector<1x256xf32> to vector<256x256xf32>
    %56 = arith.mulf %33, %55 : vector<256x256xf32>
    %57 = arith.addf %0, %56 : vector<256x256xf32>
    %58 = vector.broadcast %54 : vector<1x256xf32> to vector<256x256xf32>
    %59 = arith.addf %57, %58 : vector<256x256xf32>
    %cst_27 = arith.constant 0.000000e+00 : f32
    %60 = vector.broadcast %cst_27 : f32 to vector<256x256xf32>
    %61 = arith.maximumf %59, %60 : vector<256x256xf32>
    %c0_28 = arith.constant 0 : index
    %c0_29 = arith.constant 0 : index
    %62 = vector.load %arg7[%c0_28, %c0_29] : memref<256x256xf32, #tpu.memory_space<vmem>>, vector<256x256xf32>
    tpu.vector_store %arg7[%c0_28, %c0_29], %61 {strides = array<i32>} : memref<256x256xf32, #tpu.memory_space<vmem>>, vector<256x256xf32>,
    return
  }
}

</mosaic_0001>

<llo_original>
// kernel: fc_res_block.1
$region0: #{fc_res_block.1}
  #allocation0 [shape = 'u32[]', space=smem, size = 0x4, offset = 0x4, fixed_abs, tag = 'smem constant byte address 0x4 - core index']
  #allocation1 [shape = 'u32[72,128]{1,0:T(1,128)}', space=vmem, size = 0x9000, scoped, tag = 'internal scratch']
  %s0 = inlined_call_operand.vmem [shape: f32[256,256], index: 0, kind: input, shape index: {}]
  %s1 = inlined_call_operand.vmem [shape: bf16[256,256], index: 1, kind: input, shape index: {}]
  %s2 = inlined_call_operand.vmem [shape: bf16[256,256], index: 2, kind: input, shape index: {}]
  %s3 = inlined_call_operand.vmem [shape: f32[1,256], index: 3, kind: input, shape index: {}]
  %s4 = inlined_call_operand.vmem [shape: f32[1,256], index: 4, kind: input, shape index: {}]
  %s5 = inlined_call_operand.vmem [shape: f32[1,256], index: 5, kind: input, shape index: {}]
  %s6 = inlined_call_operand.vmem [shape: f32[1,256], index: 6, kind: input, shape index: {}]
  %s7 = inlined_call_operand.hbm [shape: f32[256,256], index: 7, kind: output, shape index: {}]
  %s8 = sld [smem:[#allocation0]]
  $region38: #{fc_res_block.1} parent=0
    _
  %s10 = ssub.s32 1, %s8
  %s11 = scalar_select 0, %s10, %s8
  $region1: #{fc_res_block.1} parent=0
    #allocation2 [shape = 'u8[262144]{0}', space=vmem, size = 0x40000, scoped, tag = 'output window, operand 0, single buffered']
    #allocation3 [shape = 's32[1]{0}', space=sflag, size = 0x4, scoped, tag = 'scoped memory for fc_res_block.1']
    %12 = vsyncpa [#allocation3], 0
    // Predicated region
    $region2: #{fc_res_block.1} parent=1 // pred_check
      _
    $region3: #{fc_res_block.1} parent=1 // pred_check_branch
      %14 = sbr.rel (0) target = $region5
    $region4: #{fc_res_block.1} parent=1 // pred_region
      _
    $region5: #{fc_res_block.1} parent=1 // pred_fallthru
      _
    // Predicated region
    $region6: #{fc_res_block.1} parent=1 // pred_check
      _
    $region7: #{fc_res_block.1} parent=1 // pred_check_branch
      %16 = sbr.rel (0) target = $region9
    $region8: #{fc_res_block.1} parent=1 // pred_region
      _
    $region9: #{fc_res_block.1} parent=1 // pred_fallthru
      _
    // Predicated region
    $region10: #{fc_res_block.1} parent=1 // pred_check
      _
    $region11: #{fc_res_block.1} parent=1 // pred_check_branch
      %18 = sbr.rel (0) target = $region13
    $region12: #{fc_res_block.1} parent=1 // pred_region
      _
    $region13: #{fc_res_block.1} parent=1 // pred_fallthru
      _
    // Predicated region
    $region14: #{fc_res_block.1} parent=1 // pred_check
      _
    $region15: #{fc_res_block.1} parent=1 // pred_check_branch
      %20 = sbr.rel (0) target = $region17
    $region16: #{fc_res_block.1} parent=1 // pred_region
      _
    $region17: #{fc_res_block.1} parent=1 // pred_fallthru
      _
    // Predicated region
    $region18: #{fc_res_block.1} parent=1 // pred_check
      _
    $region19: #{fc_res_block.1} parent=1 // pred_check_branch
      %22 = sbr.rel (0) target = $region21
    $region20: #{fc_res_block.1} parent=1 // pred_region
      _
    $region21: #{fc_res_block.1} parent=1 // pred_fallthru
      _
    // Predicated region
    $region22: #{fc_res_block.1} parent=1 // pred_check
      _
    $region23: #{fc_res_block.1} parent=1 // pred_check_branch
      %24 = sbr.rel (0) target = $region25
    $region24: #{fc_res_block.1} parent=1 // pred_region
      _
    $region25: #{fc_res_block.1} parent=1 // pred_fallthru
      _
    // Predicated region
    $region26: #{fc_res_block.1} parent=1 // pred_check
      _
    $region27: #{fc_res_block.1} parent=1 // pred_check_branch
      %26 = sbr.rel (0) target = $region29
    $region28: #{fc_res_block.1} parent=1 // pred_region
      _
    $region29: #{fc_res_block.1} parent=1 // pred_fallthru
      _
    %v27 = vld [vmem:[%s0] sm:$0xff]
    %v28 = vld [vmem:[%s0 + $0x8] sm:$0xff]
    %v29 = vld [vmem:[%s0 + $0x10] sm:$0xff]
    %v30 = vld [vmem:[%s0 + $0x18] sm:$0xff]
    %v31 = vld [vmem:[%s0 + $0x20] sm:$0xff]
    %v32 = vld [vmem:[%s0 + $0x28] sm:$0xff]
    %v33 = vld [vmem:[%s0 + $0x30] sm:$0xff]
    %v34 = vld [vmem:[%s0 + $0x38] sm:$0xff]
    %v35 = vld [vmem:[%s0 + $0x40] sm:$0xff]
    %v36 = vld [vmem:[%s0 + $0x48] sm:$0xff]
    %v37 = vld [vmem:[%s0 + $0x50] sm:$0xff]
    %v38 = vld [vmem:[%s0 + $0x58] sm:$0xff]
    %v39 = vld [vmem:[%s0 + $0x60] sm:$0xff]
    %v40 = vld [vmem:[%s0 + $0x68] sm:$0xff]
    %v41 = vld [vmem:[%s0 + $0x70] sm:$0xff]
    %v42 = vld [vmem:[%s0 + $0x78] sm:$0xff]
    %v43 = vld [vmem:[%s0 + $0x80] sm:$0xff]
    %v44 = vld [vmem:[%s0 + $0x88] sm:$0xff]
    %v45 = vld [vmem:[%s0 + $0x90] sm:$0xff]
    %v46 = vld [vmem:[%s0 + $0x98] sm:$0xff]
    %v47 = vld [vmem:[%s0 + $0xa0] sm:$0xff]
    %v48 = vld [vmem:[%s0 + $0xa8] sm:$0xff]
    %v49 = vld [vmem:[%s0 + $0xb0] sm:$0xff]
    %v50 = vld [vmem:[%s0 + $0xb8] sm:$0xff]
    %v51 = vld [vmem:[%s0 + $0xc0] sm:$0xff]
    %v52 = vld [vmem:[%s0 + $0xc8] sm:$0xff]
    %v53 = vld [vmem:[%s0 + $0xd0] sm:$0xff]
    %v54 = vld [vmem:[%s0 + $0xd8] sm:$0xff]
    %v55 = vld [vmem:[%s0 + $0xe0] sm:$0xff]
    %v56 = vld [vmem:[%s0 + $0xe8] sm:$0xff]
    %v57 = vld [vmem:[%s0 + $0xf0] sm:$0xff]
    %v58 = vld [vmem:[%s0 + $0xf8] sm:$0xff]
    %v59 = vld [vmem:[%s0 + $0x100] sm:$0xff]
    %v60 = vld [vmem:[%s0 + $0x108] sm:$0xff]
    %v61 = vld [vmem:[%s0 + $0x110] sm:$0xff]
    %v62 = vld [vmem:[%s0 + $0x118] sm:$0xff]
    %v63 = vld [vmem:[%s0 + $0x120] sm:$0xff]
    %v64 = vld [vmem:[%s0 + $0x128] sm:$0xff]
    %v65 = vld [vmem:[%s0 + $0x130] sm:$0xff]
    %v66 = vld [vmem:[%s0 + $0x138] sm:$0xff]
    %v67 = vld [vmem:[%s0 + $0x140] sm:$0xff]
    %v68 = vld [vmem:[%s0 + $0x148] sm:$0xff]
    %v69 = vld [vmem:[%s0 + $0x150] sm:$0xff]
    %v70 = vld [vmem:[%s0 + $0x158] sm:$0xff]
    %v71 = vld [vmem:[%s0 + $0x160] sm:$0xff]
    %v72 = vld [vmem:[%s0 + $0x168] sm:$0xff]
    %v73 = vld [vmem:[%s0 + $0x170] sm:$0xff]
    %v74 = vld [vmem:[%s0 + $0x178] sm:$0xff]
    %v75 = vld [vmem:[%s0 + $0x180] sm:$0xff]
    %v76 = vld [vmem:[%s0 + $0x188] sm:$0xff]
    %v77 = vld [vmem:[%s0 + $0x190] sm:$0xff]
    %v78 = vld [vmem:[%s0 + $0x198] sm:$0xff]
    %v79 = vld [vmem:[%s0 + $0x1a0] sm:$0xff]
    %v80 = vld [vmem:[%s0 + $0x1a8] sm:$0xff]
    %v81 = vld [vmem:[%s0 + $0x1b0] sm:$0xff]
    %v82 = vld [vmem:[%s0 + $0x1b8] sm:$0xff]
    %v83 = vld [vmem:[%s0 + $0x1c0] sm:$0xff]
    %v84 = vld [vmem:[%s0 + $0x1c8] sm:$0xff]
    %v85 = vld [vmem:[%s0 + $0x1d0] sm:$0xff]
    %v86 = vld [vmem:[%s0 + $0x1d8] sm:$0xff]
    %v87 = vld [vmem:[%s0 + $0x1e0] sm:$0xff]
    %v88 = vld [vmem:[%s0 + $0x1e8] sm:$0xff]
    %v89 = vld [vmem:[%s0 + $0x1f0] sm:$0xff]
    %v90 = vld [vmem:[%s0 + $0x1f8] sm:$0xff]
    %v91 = vpack.c.bf16 %v29, %v27
    %v92 = vpack.c.bf16 %v30, %v28
    %v93 = vpack.c.bf16 %v33, %v31
    %v94 = vpack.c.bf16 %v34, %v32
    %v95 = vpack.c.bf16 %v37, %v35
    %v96 = vpack.c.bf16 %v38, %v36
    %v97 = vpack.c.bf16 %v41, %v39
    %v98 = vpack.c.bf16 %v42, %v40
    %v99 = vpack.c.bf16 %v45, %v43
    %v100 = vpack.c.bf16 %v46, %v44
    %v101 = vpack.c.bf16 %v49, %v47
    %v102 = vpack.c.bf16 %v50, %v48
    %v103 = vpack.c.bf16 %v53, %v51
    %v104 = vpack.c.bf16 %v54, %v52
    %v105 = vpack.c.bf16 %v57, %v55
    %v106 = vpack.c.bf16 %v58, %v56
    %v107 = vpack.c.bf16 %v61, %v59
    %v108 = vpack.c.bf16 %v62, %v60
    %v109 = vpack.c.bf16 %v65, %v63
    %v110 = vpack.c.bf16 %v66, %v64
    %v111 = vpack.c.bf16 %v69, %v67
    %v112 = vpack.c.bf16 %v70, %v68
    %v113 = vpack.c.bf16 %v73, %v71
    %v114 = vpack.c.bf16 %v74, %v72
    %v115 = vpack.c.bf16 %v77, %v75
    %v116 = vpack.c.bf16 %v78, %v76
    %v117 = vpack.c.bf16 %v81, %v79
    %v118 = vpack.c.bf16 %v82, %v80
    %v119 = vpack.c.bf16 %v85, %v83
    %v120 = vpack.c.bf16 %v86, %v84
    %v121 = vpack.c.bf16 %v89, %v87
    %v122 = vpack.c.bf16 %v90, %v88
    %v123 = vld [vmem:[%s1] sm:$0xff]
    %v124 = vld [vmem:[%s1 + $0x8] sm:$0xff]
    %v125 = vld [vmem:[%s1 + $0x10] sm:$0xff]
    %v126 = vld [vmem:[%s1 + $0x18] sm:$0xff]
    %v127 = vld [vmem:[%s1 + $0x20] sm:$0xff]
    %v128 = vld [vmem:[%s1 + $0x28] sm:$0xff]
    %v129 = vld [vmem:[%s1 + $0x30] sm:$0xff]
    %v130 = vld [vmem:[%s1 + $0x38] sm:$0xff]
    %v131 = vld [vmem:[%s1 + $0x40] sm:$0xff]
    %v132 = vld [vmem:[%s1 + $0x48] sm:$0xff]
    %v133 = vld [vmem:[%s1 + $0x50] sm:$0xff]
    %v134 = vld [vmem:[%s1 + $0x58] sm:$0xff]
    %v135 = vld [vmem:[%s1 + $0x60] sm:$0xff]
    %v136 = vld [vmem:[%s1 + $0x68] sm:$0xff]
    %v137 = vld [vmem:[%s1 + $0x70] sm:$0xff]
    %v138 = vld [vmem:[%s1 + $0x78] sm:$0xff]
    %v139 = vld [vmem:[%s1 + $0x80] sm:$0xff]
    %v140 = vld [vmem:[%s1 + $0x88] sm:$0xff]
    %v141 = vld [vmem:[%s1 + $0x90] sm:$0xff]
    %v142 = vld [vmem:[%s1 + $0x98] sm:$0xff]
    %v143 = vld [vmem:[%s1 + $0xa0] sm:$0xff]
    %v144 = vld [vmem:[%s1 + $0xa8] sm:$0xff]
    %v145 = vld [vmem:[%s1 + $0xb0] sm:$0xff]
    %v146 = vld [vmem:[%s1 + $0xb8] sm:$0xff]
    %v147 = vld [vmem:[%s1 + $0xc0] sm:$0xff]
    %v148 = vld [vmem:[%s1 + $0xc8] sm:$0xff]
    %v149 = vld [vmem:[%s1 + $0xd0] sm:$0xff]
    %v150 = vld [vmem:[%s1 + $0xd8] sm:$0xff]
    %v151 = vld [vmem:[%s1 + $0xe0] sm:$0xff]
    %v152 = vld [vmem:[%s1 + $0xe8] sm:$0xff]
    %v153 = vld [vmem:[%s1 + $0xf0] sm:$0xff]
    %v154 = vld [vmem:[%s1 + $0xf8] sm:$0xff]
    %v187 = vunpack.c.l.b16 %v123
    %v188 = vunpack.c.h.b16 %v123
    %v189 = vunpack.c.l.b16 %v124
    %v190 = vunpack.c.h.b16 %v124
    %v191 = vunpack.c.l.b16 %v125
    %v192 = vunpack.c.h.b16 %v125
    %v193 = vunpack.c.l.b16 %v126
    %v194 = vunpack.c.h.b16 %v126
    %v195 = vunpack.c.l.b16 %v127
    %v196 = vunpack.c.h.b16 %v127
    %v197 = vunpack.c.l.b16 %v128
    %v198 = vunpack.c.h.b16 %v128
    %v199 = vunpack.c.l.b16 %v129
    %v200 = vunpack.c.h.b16 %v129
    %v201 = vunpack.c.l.b16 %v130
    %v202 = vunpack.c.h.b16 %v130
    %v203 = vunpack.c.l.b16 %v131
    %v204 = vunpack.c.h.b16 %v131
    %v205 = vunpack.c.l.b16 %v132
    %v206 = vunpack.c.h.b16 %v132
    %v207 = vunpack.c.l.b16 %v133
    %v208 = vunpack.c.h.b16 %v133
    %v209 = vunpack.c.l.b16 %v134
    %v210 = vunpack.c.h.b16 %v134
    %v211 = vunpack.c.l.b16 %v135
    %v212 = vunpack.c.h.b16 %v135
    %v213 = vunpack.c.l.b16 %v136
    %v214 = vunpack.c.h.b16 %v136
    %v215 = vunpack.c.l.b16 %v137
    %v216 = vunpack.c.h.b16 %v137
    %v217 = vunpack.c.l.b16 %v138
    %v218 = vunpack.c.h.b16 %v138
    %v219 = vunpack.c.l.b16 %v139
    %v220 = vunpack.c.h.b16 %v139
    %v221 = vunpack.c.l.b16 %v140
    %v222 = vunpack.c.h.b16 %v140
    %v223 = vunpack.c.l.b16 %v141
    %v224 = vunpack.c.h.b16 %v141
    %v225 = vunpack.c.l.b16 %v142
    %v226 = vunpack.c.h.b16 %v142
    %v227 = vunpack.c.l.b16 %v143
    %v228 = vunpack.c.h.b16 %v143
    %v229 = vunpack.c.l.b16 %v144
    %v230 = vunpack.c.h.b16 %v144
    %v231 = vunpack.c.l.b16 %v145
    %v232 = vunpack.c.h.b16 %v145
    %v233 = vunpack.c.l.b16 %v146
    %v234 = vunpack.c.h.b16 %v146
    %v235 = vunpack.c.l.b16 %v147
    %v236 = vunpack.c.h.b16 %v147
    %v237 = vunpack.c.l.b16 %v148
    %v238 = vunpack.c.h.b16 %v148
    %v239 = vunpack.c.l.b16 %v149
    %v240 = vunpack.c.h.b16 %v149
    %v241 = vunpack.c.l.b16 %v150
    %v242 = vunpack.c.h.b16 %v150
    %v243 = vunpack.c.l.b16 %v151
    %v244 = vunpack.c.h.b16 %v151
    %v245 = vunpack.c.l.b16 %v152
    %v246 = vunpack.c.h.b16 %v152
    %v247 = vunpack.c.l.b16 %v153
    %v248 = vunpack.c.h.b16 %v153
    %v249 = vunpack.c.l.b16 %v154
    %v250 = vunpack.c.h.b16 %v154
    %v251 = vpack.c.b16 %v189, %v187
    %v252 = vpack.c.b16 %v190, %v188
    %v253 = vpack.c.b16 %v193, %v191
    %v254 = vpack.c.b16 %v194, %v192
    %v255 = vpack.c.b16 %v197, %v195
    %v256 = vpack.c.b16 %v198, %v196
    %v257 = vpack.c.b16 %v201, %v199
    %v258 = vpack.c.b16 %v202, %v200
    %v259 = vpack.c.b16 %v205, %v203
    %v260 = vpack.c.b16 %v206, %v204
    %v261 = vpack.c.b16 %v209, %v207
    %v262 = vpack.c.b16 %v210, %v208
    %v263 = vpack.c.b16 %v213, %v211
    %v264 = vpack.c.b16 %v214, %v212
    %v265 = vpack.c.b16 %v217, %v215
    %v266 = vpack.c.b16 %v218, %v216
    %v267 = vpack.c.b16 %v221, %v219
    %v268 = vpack.c.b16 %v222, %v220
    %v269 = vpack.c.b16 %v225, %v223
    %v270 = vpack.c.b16 %v226, %v224
    %v271 = vpack.c.b16 %v229, %v227
    %v272 = vpack.c.b16 %v230, %v228
    %v273 = vpack.c.b16 %v233, %v231
    %v274 = vpack.c.b16 %v234, %v232
    %v275 = vpack.c.b16 %v237, %v235
    %v276 = vpack.c.b16 %v238, %v236
    %v277 = vpack.c.b16 %v241, %v239
    %v278 = vpack.c.b16 %v242, %v240
    %v279 = vpack.c.b16 %v245, %v243
    %v280 = vpack.c.b16 %v246, %v244
    %v281 = vpack.c.b16 %v249, %v247
    %v282 = vpack.c.b16 %v250, %v248
    %315 = vmatpush.bf16.msra.mxu0 %v265
    %316 = vmatpush.bf16.msra.mxu0 %v263
    %317 = vmatpush.bf16.msra.mxu0 %v261
    %318 = vmatpush.bf16.msra.mxu0 %v259
    %319 = vmatpush.bf16.msra.mxu0 %v257
    %320 = vmatpush.bf16.msra.mxu0 %v255
    %321 = vmatpush.bf16.msra.mxu0 %v253
    %322 = vmatpush.bf16.msra.mxu0 %v251
    %323 = vmatmul.bf16.gmra.mxu0 %v91
    %v324 = vpop.f32.mrf.mxu0
    %v325 = vadd.f32 0.0, %v324
    %v326 = vpop.f32.mrf.mxu0
    %v327 = vadd.f32 0.0, %v326
    %328 = vmatmul.bf16.gmra.mxu0 %v93
    %v329 = vpop.f32.mrf.mxu0
    %v330 = vadd.f32 0.0, %v329
    %v331 = vpop.f32.mrf.mxu0
    %v332 = vadd.f32 0.0, %v331
    %333 = vmatmul.bf16.gmra.mxu0 %v95
    %v334 = vpop.f32.mrf.mxu0
    %v335 = vadd.f32 0.0, %v334
    %v336 = vpop.f32.mrf.mxu0
    %v337 = vadd.f32 0.0, %v336
    %338 = vmatmul.bf16.gmra.mxu0 %v97
    %v339 = vpop.f32.mrf.mxu0
    %v340 = vadd.f32 0.0, %v339
    %v341 = vpop.f32.mrf.mxu0
    %v342 = vadd.f32 0.0, %v341
    %343 = vmatmul.bf16.gmra.mxu0 %v99
    %v344 = vpop.f32.mrf.mxu0
    %v345 = vadd.f32 0.0, %v344
    %v346 = vpop.f32.mrf.mxu0
    %v347 = vadd.f32 0.0, %v346
    %348 = vmatmul.bf16.gmra.mxu0 %v101
    %v349 = vpop.f32.mrf.mxu0
    %v350 = vadd.f32 0.0, %v349
    %v351 = vpop.f32.mrf.mxu0
    %v352 = vadd.f32 0.0, %v351
    %353 = vmatmul.bf16.gmra.mxu0 %v103
    %v354 = vpop.f32.mrf.mxu0
    %v355 = vadd.f32 0.0, %v354
    %v356 = vpop.f32.mrf.mxu0
    %v357 = vadd.f32 0.0, %v356
    %358 = vmatmul.bf16.gmra.mxu0 %v105
    %v359 = vpop.f32.mrf.mxu0
    %v360 = vadd.f32 0.0, %v359
    %v361 = vpop.f32.mrf.mxu0
    %v362 = vadd.f32 0.0, %v361
    %363 = vmatmul.bf16.gmra.mxu0 %v107
    %v364 = vpop.f32.mrf.mxu0
    %v365 = vadd.f32 0.0, %v364
    %v366 = vpop.f32.mrf.mxu0
    %v367 = vadd.f32 0.0, %v366
    %368 = vmatmul.bf16.gmra.mxu0 %v109
    %v369 = vpop.f32.mrf.mxu0
    %v370 = vadd.f32 0.0, %v369
    %v371 = vpop.f32.mrf.mxu0
    %v372 = vadd.f32 0.0, %v371
    %373 = vmatmul.bf16.gmra.mxu0 %v111
    %v374 = vpop.f32.mrf.mxu0
    %v375 = vadd.f32 0.0, %v374
    %v376 = vpop.f32.mrf.mxu0
    %v377 = vadd.f32 0.0, %v376
    %378 = vmatmul.bf16.gmra.mxu0 %v113
    %v379 = vpop.f32.mrf.mxu0
    %v380 = vadd.f32 0.0, %v379
    %v381 = vpop.f32.mrf.mxu0
    %v382 = vadd.f32 0.0, %v381
    %383 = vmatmul.bf16.gmra.mxu0 %v115
    %v384 = vpop.f32.mrf.mxu0
    %v385 = vadd.f32 0.0, %v384
    %v386 = vpop.f32.mrf.mxu0
    %v387 = vadd.f32 0.0, %v386
    %388 = vmatmul.bf16.gmra.mxu0 %v117
    %v389 = vpop.f32.mrf.mxu0
    %v390 = vadd.f32 0.0, %v389
    %v391 = vpop.f32.mrf.mxu0
    %v392 = vadd.f32 0.0, %v391
    %393 = vmatmul.bf16.gmra.mxu0 %v119
    %v394 = vpop.f32.mrf.mxu0
    %v395 = vadd.f32 0.0, %v394
    %v396 = vpop.f32.mrf.mxu0
    %v397 = vadd.f32 0.0, %v396
    %398 = vmatmul.bf16.gmra.mxu0 %v121
    %v399 = vpop.f32.mrf.mxu0
    %v400 = vadd.f32 0.0, %v399
    %v401 = vpop.f32.mrf.mxu0
    %v402 = vadd.f32 0.0, %v401
    %403 = vdwg.mxu0
    %404 = vmatpush.bf16.msra.mxu0 %v281
    %405 = vmatpush.bf16.msra.mxu0 %v279
    %406 = vmatpush.bf16.msra.mxu0 %v277
    %407 = vmatpush.bf16.msra.mxu0 %v275
    %408 = vmatpush.bf16.msra.mxu0 %v273
    %409 = vmatpush.bf16.msra.mxu0 %v271
    %410 = vmatpush.bf16.msra.mxu0 %v269
    %411 = vmatpush.bf16.msra.mxu0 %v267
    %412 = vmatmul.bf16.gmra.mxu0 %v92
    %v413 = vpop.f32.mrf.mxu0
    %v414 = vadd.f32 %v325, %v413
    %v415 = vpop.f32.mrf.mxu0
    %v416 = vadd.f32 %v327, %v415
    %417 = vmatmul.bf16.gmra.mxu0 %v94
    %v418 = vpop.f32.mrf.mxu0
    %v419 = vadd.f32 %v330, %v418
    %v420 = vpop.f32.mrf.mxu0
    %v421 = vadd.f32 %v332, %v420
    %422 = vmatmul.bf16.gmra.mxu0 %v96
    %v423 = vpop.f32.mrf.mxu0
    %v424 = vadd.f32 %v335, %v423
    %v425 = vpop.f32.mrf.mxu0
    %v426 = vadd.f32 %v337, %v425
    %427 = vmatmul.bf16.gmra.mxu0 %v98
    %v428 = vpop.f32.mrf.mxu0
    %v429 = vadd.f32 %v340, %v428
    %v430 = vpop.f32.mrf.mxu0
    %v431 = vadd.f32 %v342, %v430
    %432 = vmatmul.bf16.gmra.mxu0 %v100
    %v433 = vpop.f32.mrf.mxu0
    %v434 = vadd.f32 %v345, %v433
    %v435 = vpop.f32.mrf.mxu0
    %v436 = vadd.f32 %v347, %v435
    %437 = vmatmul.bf16.gmra.mxu0 %v102
    %v438 = vpop.f32.mrf.mxu0
    %v439 = vadd.f32 %v350, %v438
    %v440 = vpop.f32.mrf.mxu0
    %v441 = vadd.f32 %v352, %v440
    %442 = vmatmul.bf16.gmra.mxu0 %v104
    %v443 = vpop.f32.mrf.mxu0
    %v444 = vadd.f32 %v355, %v443
    %v445 = vpop.f32.mrf.mxu0
    %v446 = vadd.f32 %v357, %v445
    %447 = vmatmul.bf16.gmra.mxu0 %v106
    %v448 = vpop.f32.mrf.mxu0
    %v449 = vadd.f32 %v360, %v448
    %v450 = vpop.f32.mrf.mxu0
    %v451 = vadd.f32 %v362, %v450
    %452 = vmatmul.bf16.gmra.mxu0 %v108
    %v453 = vpop.f32.mrf.mxu0
    %v454 = vadd.f32 %v365, %v453
    %v455 = vpop.f32.mrf.mxu0
    %v456 = vadd.f32 %v367, %v455
    %457 = vmatmul.bf16.gmra.mxu0 %v110
    %v458 = vpop.f32.mrf.mxu0
    %v459 = vadd.f32 %v370, %v458
    %v460 = vpop.f32.mrf.mxu0
    %v461 = vadd.f32 %v372, %v460
    %462 = vmatmul.bf16.gmra.mxu0 %v112
    %v463 = vpop.f32.mrf.mxu0
    %v464 = vadd.f32 %v375, %v463
    %v465 = vpop.f32.mrf.mxu0
    %v466 = vadd.f32 %v377, %v465
    %467 = vmatmul.bf16.gmra.mxu0 %v114
    %v468 = vpop.f32.mrf.mxu0
    %v469 = vadd.f32 %v380, %v468
    %v470 = vpop.f32.mrf.mxu0
    %v471 = vadd.f32 %v382, %v470
    %472 = vmatmul.bf16.gmra.mxu0 %v116
    %v473 = vpop.f32.mrf.mxu0
    %v474 = vadd.f32 %v385, %v473
    %v475 = vpop.f32.mrf.mxu0
    %v476 = vadd.f32 %v387, %v475
    %477 = vmatmul.bf16.gmra.mxu0 %v118
    %v478 = vpop.f32.mrf.mxu0
    %v479 = vadd.f32 %v390, %v478
    %v480 = vpop.f32.mrf.mxu0
    %v481 = vadd.f32 %v392, %v480
    %482 = vmatmul.bf16.gmra.mxu0 %v120
    %v483 = vpop.f32.mrf.mxu0
    %v484 = vadd.f32 %v395, %v483
    %v485 = vpop.f32.mrf.mxu0
    %v486 = vadd.f32 %v397, %v485
    %487 = vmatmul.bf16.gmra.mxu0 %v122
    %v488 = vpop.f32.mrf.mxu0
    %v489 = vadd.f32 %v400, %v488
    %v490 = vpop.f32.mrf.mxu0
    %v491 = vadd.f32 %v402, %v490
    %492 = vdwg.mxu0
    %493 = vmatpush.bf16.msra.mxu0 %v266
    %494 = vmatpush.bf16.msra.mxu0 %v264
    %495 = vmatpush.bf16.msra.mxu0 %v262
    %496 = vmatpush.bf16.msra.mxu0 %v260
    %497 = vmatpush.bf16.msra.mxu0 %v258
    %498 = vmatpush.bf16.msra.mxu0 %v256
    %499 = vmatpush.bf16.msra.mxu0 %v254
    %500 = vmatpush.bf16.msra.mxu0 %v252
    %501 = vmatmul.bf16.gmra.mxu0 %v91
    %v502 = vpop.f32.mrf.mxu0
    %v503 = vadd.f32 0.0, %v502
    %v504 = vpop.f32.mrf.mxu0
    %v505 = vadd.f32 0.0, %v504
    %506 = vmatmul.bf16.gmra.mxu0 %v93
    %v507 = vpop.f32.mrf.mxu0
    %v508 = vadd.f32 0.0, %v507
    %v509 = vpop.f32.mrf.mxu0
    %v510 = vadd.f32 0.0, %v509
    %511 = vmatmul.bf16.gmra.mxu0 %v95
    %v512 = vpop.f32.mrf.mxu0
    %v513 = vadd.f32 0.0, %v512
    %v514 = vpop.f32.mrf.mxu0
    %v515 = vadd.f32 0.0, %v514
    %516 = vmatmul.bf16.gmra.mxu0 %v97
    %v517 = vpop.f32.mrf.mxu0
    %v518 = vadd.f32 0.0, %v517
    %v519 = vpop.f32.mrf.mxu0
    %v520 = vadd.f32 0.0, %v519
    %521 = vmatmul.bf16.gmra.mxu0 %v99
    %v522 = vpop.f32.mrf.mxu0
    %v523 = vadd.f32 0.0, %v522
    %v524 = vpop.f32.mrf.mxu0
    %v525 = vadd.f32 0.0, %v524
    %526 = vmatmul.bf16.gmra.mxu0 %v101
    %v527 = vpop.f32.mrf.mxu0
    %v528 = vadd.f32 0.0, %v527
    %v529 = vpop.f32.mrf.mxu0
    %v530 = vadd.f32 0.0, %v529
    %531 = vmatmul.bf16.gmra.mxu0 %v103
    %v532 = vpop.f32.mrf.mxu0
    %v533 = vadd.f32 0.0, %v532
    %v534 = vpop.f32.mrf.mxu0
    %v535 = vadd.f32 0.0, %v534
    %536 = vmatmul.bf16.gmra.mxu0 %v105
    %v537 = vpop.f32.mrf.mxu0
    %v538 = vadd.f32 0.0, %v537
    %v539 = vpop.f32.mrf.mxu0
    %v540 = vadd.f32 0.0, %v539
    %541 = vmatmul.bf16.gmra.mxu0 %v107
    %v542 = vpop.f32.mrf.mxu0
    %v543 = vadd.f32 0.0, %v542
    %v544 = vpop.f32.mrf.mxu0
    %v545 = vadd.f32 0.0, %v544
    %546 = vmatmul.bf16.gmra.mxu0 %v109
    %v547 = vpop.f32.mrf.mxu0
    %v548 = vadd.f32 0.0, %v547
    %v549 = vpop.f32.mrf.mxu0
    %v550 = vadd.f32 0.0, %v549
    %551 = vmatmul.bf16.gmra.mxu0 %v111
    %v552 = vpop.f32.mrf.mxu0
    %v553 = vadd.f32 0.0, %v552
    %v554 = vpop.f32.mrf.mxu0
    %v555 = vadd.f32 0.0, %v554
    %556 = vmatmul.bf16.gmra.mxu0 %v113
    %v557 = vpop.f32.mrf.mxu0
    %v558 = vadd.f32 0.0, %v557
    %v559 = vpop.f32.mrf.mxu0
    %v560 = vadd.f32 0.0, %v559
    %561 = vmatmul.bf16.gmra.mxu0 %v115
    %v562 = vpop.f32.mrf.mxu0
    %v563 = vadd.f32 0.0, %v562
    %v564 = vpop.f32.mrf.mxu0
    %v565 = vadd.f32 0.0, %v564
    %566 = vmatmul.bf16.gmra.mxu0 %v117
    %v567 = vpop.f32.mrf.mxu0
    %v568 = vadd.f32 0.0, %v567
    %v569 = vpop.f32.mrf.mxu0
    %v570 = vadd.f32 0.0, %v569
    %571 = vmatmul.bf16.gmra.mxu0 %v119
    %v572 = vpop.f32.mrf.mxu0
    %v573 = vadd.f32 0.0, %v572
    %v574 = vpop.f32.mrf.mxu0
    %v575 = vadd.f32 0.0, %v574
    %576 = vmatmul.bf16.gmra.mxu0 %v121
    %v577 = vpop.f32.mrf.mxu0
    %v578 = vadd.f32 0.0, %v577
    %v579 = vpop.f32.mrf.mxu0
    %v580 = vadd.f32 0.0, %v579
    %581 = vdwg.mxu0
    %582 = vmatpush.bf16.msra.mxu0 %v282
    %583 = vmatpush.bf16.msra.mxu0 %v280
    %584 = vmatpush.bf16.msra.mxu0 %v278
    %585 = vmatpush.bf16.msra.mxu0 %v276
    %586 = vmatpush.bf16.msra.mxu0 %v274
    %587 = vmatpush.bf16.msra.mxu0 %v272
    %588 = vmatpush.bf16.msra.mxu0 %v270
    %589 = vmatpush.bf16.msra.mxu0 %v268
    %590 = vmatmul.bf16.gmra.mxu0 %v92
    %v591 = vpop.f32.mrf.mxu0
    %v592 = vadd.f32 %v503, %v591
    %v593 = vpop.f32.mrf.mxu0
    %v594 = vadd.f32 %v505, %v593
    %595 = vmatmul.bf16.gmra.mxu0 %v94
    %v596 = vpop.f32.mrf.mxu0
    %v597 = vadd.f32 %v508, %v596
    %v598 = vpop.f32.mrf.mxu0
    %v599 = vadd.f32 %v510, %v598
    %600 = vmatmul.bf16.gmra.mxu0 %v96
    %v601 = vpop.f32.mrf.mxu0
    %v602 = vadd.f32 %v513, %v601
    %v603 = vpop.f32.mrf.mxu0
    %v604 = vadd.f32 %v515, %v603
    %605 = vmatmul.bf16.gmra.mxu0 %v98
    %v606 = vpop.f32.mrf.mxu0
    %v607 = vadd.f32 %v518, %v606
    %v608 = vpop.f32.mrf.mxu0
    %v609 = vadd.f32 %v520, %v608
    %610 = vmatmul.bf16.gmra.mxu0 %v100
    %v611 = vpop.f32.mrf.mxu0
    %v612 = vadd.f32 %v523, %v611
    %v613 = vpop.f32.mrf.mxu0
    %v614 = vadd.f32 %v525, %v613
    %615 = vmatmul.bf16.gmra.mxu0 %v102
    %v616 = vpop.f32.mrf.mxu0
    %v617 = vadd.f32 %v528, %v616
    %v618 = vpop.f32.mrf.mxu0
    %v619 = vadd.f32 %v530, %v618
    %620 = vmatmul.bf16.gmra.mxu0 %v104
    %v621 = vpop.f32.mrf.mxu0
    %v622 = vadd.f32 %v533, %v621
    %v623 = vpop.f32.mrf.mxu0
    %v624 = vadd.f32 %v535, %v623
    %625 = vmatmul.bf16.gmra.mxu0 %v106
    %v626 = vpop.f32.mrf.mxu0
    %v627 = vadd.f32 %v538, %v626
    %v628 = vpop.f32.mrf.mxu0
    %v629 = vadd.f32 %v540, %v628
    %630 = vmatmul.bf16.gmra.mxu0 %v108
    %v631 = vpop.f32.mrf.mxu0
    %v632 = vadd.f32 %v543, %v631
    %v633 = vpop.f32.mrf.mxu0
    %v634 = vadd.f32 %v545, %v633
    %635 = vmatmul.bf16.gmra.mxu0 %v110
    %v636 = vpop.f32.mrf.mxu0
    %v637 = vadd.f32 %v548, %v636
    %v638 = vpop.f32.mrf.mxu0
    %v639 = vadd.f32 %v550, %v638
    %640 = vmatmul.bf16.gmra.mxu0 %v112
    %v641 = vpop.f32.mrf.mxu0
    %v642 = vadd.f32 %v553, %v641
    %v643 = vpop.f32.mrf.mxu0
    %v644 = vadd.f32 %v555, %v643
    %645 = vmatmul.bf16.gmra.mxu0 %v114
    %v646 = vpop.f32.mrf.mxu0
    %v647 = vadd.f32 %v558, %v646
    %v648 = vpop.f32.mrf.mxu0
    %v649 = vadd.f32 %v560, %v648
    %650 = vmatmul.bf16.gmra.mxu0 %v116
    %v651 = vpop.f32.mrf.mxu0
    %v652 = vadd.f32 %v563, %v651
    %v653 = vpop.f32.mrf.mxu0
    %v654 = vadd.f32 %v565, %v653
    %655 = vmatmul.bf16.gmra.mxu0 %v118
    %v656 = vpop.f32.mrf.mxu0
    %v657 = vadd.f32 %v568, %v656
    %v658 = vpop.f32.mrf.mxu0
    %v659 = vadd.f32 %v570, %v658
    %660 = vmatmul.bf16.gmra.mxu0 %v120
    %v661 = vpop.f32.mrf.mxu0
    %v662 = vadd.f32 %v573, %v661
    %v663 = vpop.f32.mrf.mxu0
    %v664 = vadd.f32 %v575, %v663
    %665 = vmatmul.bf16.gmra.mxu0 %v122
    %v666 = vpop.f32.mrf.mxu0
    %v667 = vadd.f32 %v578, %v666
    %v668 = vpop.f32.mrf.mxu0
    %v669 = vadd.f32 %v580, %v668
    %670 = vdwg.mxu0
    %v671 = vadd.f32 %v414, %v416
    %v672 = vadd.f32 %v671, %v419
    %v673 = vadd.f32 %v672, %v421
    %v674 = vadd.f32 %v673, %v424
    %v675 = vadd.f32 %v674, %v426
    %v676 = vadd.f32 %v675, %v429
    %v677 = vadd.f32 %v676, %v431
    %v678 = vadd.f32 %v677, %v434
    %v679 = vadd.f32 %v678, %v436
    %v680 = vadd.f32 %v679, %v439
    %v681 = vadd.f32 %v680, %v441
    %v682 = vadd.f32 %v681, %v444
    %v683 = vadd.f32 %v682, %v446
    %v684 = vadd.f32 %v683, %v449
    %v685 = vadd.f32 %v684, %v451
    %v686 = vadd.f32 %v685, %v454
    %v687 = vadd.f32 %v686, %v456
    %v688 = vadd.f32 %v687, %v459
    %v689 = vadd.f32 %v688, %v461
    %v690 = vadd.f32 %v689, %v464
    %v691 = vadd.f32 %v690, %v466
    %v692 = vadd.f32 %v691, %v469
    %v693 = vadd.f32 %v692, %v471
    %v694 = vadd.f32 %v693, %v474
    %v695 = vadd.f32 %v694, %v476
    %v696 = vadd.f32 %v695, %v479
    %v697 = vadd.f32 %v696, %v481
    %v698 = vadd.f32 %v697, %v484
    %v699 = vadd.f32 %v698, %v486
    %v700 = vadd.f32 %v699, %v489
    %v701 = vadd.f32 %v700, %v491
    %v702 = vrot.slane %v701, 4
    %v703 = vadd.f32 %v701, %v702
    %v704 = vrot.slane %v703, 2
    %v705 = vadd.f32 %v703, %v704
    %v706 = vrot.slane %v705, 1
    %v707 = vadd.f32 %v705, %v706
    %v708 = vadd.f32 %v592, %v594
    %v709 = vadd.f32 %v708, %v597
    %v710 = vadd.f32 %v709, %v599
    %v711 = vadd.f32 %v710, %v602
    %v712 = vadd.f32 %v711, %v604
    %v713 = vadd.f32 %v712, %v607
    %v714 = vadd.f32 %v713, %v609
    %v715 = vadd.f32 %v714, %v612
    %v716 = vadd.f32 %v715, %v614
    %v717 = vadd.f32 %v716, %v617
    %v718 = vadd.f32 %v717, %v619
    %v719 = vadd.f32 %v718, %v622
    %v720 = vadd.f32 %v719, %v624
    %v721 = vadd.f32 %v720, %v627
    %v722 = vadd.f32 %v721, %v629
    %v723 = vadd.f32 %v722, %v632
    %v724 = vadd.f32 %v723, %v634
    %v725 = vadd.f32 %v724, %v637
    %v726 = vadd.f32 %v725, %v639
    %v727 = vadd.f32 %v726, %v642
    %v728 = vadd.f32 %v727, %v644
    %v729 = vadd.f32 %v728, %v647
    %v730 = vadd.f32 %v729, %v649
    %v731 = vadd.f32 %v730, %v652
    %v732 = vadd.f32 %v731, %v654
    %v733 = vadd.f32 %v732, %v657
    %v734 = vadd.f32 %v733, %v659
    %v735 = vadd.f32 %v734, %v662
    %v736 = vadd.f32 %v735, %v664
    %v737 = vadd.f32 %v736, %v667
    %v738 = vadd.f32 %v737, %v669
    %v739 = vrot.slane %v738, 4
    %v740 = vadd.f32 %v738, %v739
    %v741 = vrot.slane %v740, 2
    %v742 = vadd.f32 %v740, %v741
    %v743 = vrot.slane %v742, 1
    %v744 = vadd.f32 %v742, %v743
    %v745 = vmul.f32 %v707, 0.00390625
    %v746 = vmul.f32 %v744, 0.00390625
    %v747 = vmul.f32 %v414, %v414
    %v748 = vmul.f32 %v592, %v592
    %v749 = vmul.f32 %v416, %v416
    %v750 = vmul.f32 %v594, %v594
    %v751 = vmul.f32 %v419, %v419
    %v752 = vmul.f32 %v597, %v597
    %v753 = vmul.f32 %v421, %v421
    %v754 = vmul.f32 %v599, %v599
    %v755 = vmul.f32 %v424, %v424
    %v756 = vmul.f32 %v602, %v602
    %v757 = vmul.f32 %v426, %v426
    %v758 = vmul.f32 %v604, %v604
    %v759 = vmul.f32 %v429, %v429
    %v760 = vmul.f32 %v607, %v607
    %v761 = vmul.f32 %v431, %v431
    %v762 = vmul.f32 %v609, %v609
    %v763 = vmul.f32 %v434, %v434
    %v764 = vmul.f32 %v612, %v612
    %v765 = vmul.f32 %v436, %v436
    %v766 = vmul.f32 %v614, %v614
    %v767 = vmul.f32 %v439, %v439
    %v768 = vmul.f32 %v617, %v617
    %v769 = vmul.f32 %v441, %v441
    %v770 = vmul.f32 %v619, %v619
    %v771 = vmul.f32 %v444, %v444
    %v772 = vmul.f32 %v622, %v622
    %v773 = vmul.f32 %v446, %v446
    %v774 = vmul.f32 %v624, %v624
    %v775 = vmul.f32 %v449, %v449
    %v776 = vmul.f32 %v627, %v627
    %v777 = vmul.f32 %v451, %v451
    %v778 = vmul.f32 %v629, %v629
    %v779 = vmul.f32 %v454, %v454
    %v780 = vmul.f32 %v632, %v632
    %v781 = vmul.f32 %v456, %v456
    %v782 = vmul.f32 %v634, %v634
    %v783 = vmul.f32 %v459, %v459
    %v784 = vmul.f32 %v637, %v637
    %v785 = vmul.f32 %v461, %v461
    %v786 = vmul.f32 %v639, %v639
    %v787 = vmul.f32 %v464, %v464
    %v788 = vmul.f32 %v642, %v642
    %v789 = vmul.f32 %v466, %v466
    %v790 = vmul.f32 %v644, %v644
    %v791 = vmul.f32 %v469, %v469
    %v792 = vmul.f32 %v647, %v647
    %v793 = vmul.f32 %v471, %v471
    %v794 = vmul.f32 %v649, %v649
    %v795 = vmul.f32 %v474, %v474
    %v796 = vmul.f32 %v652, %v652
    %v797 = vmul.f32 %v476, %v476
    %v798 = vmul.f32 %v654, %v654
    %v799 = vmul.f32 %v479, %v479
    %v800 = vmul.f32 %v657, %v657
    %v801 = vmul.f32 %v481, %v481
    %v802 = vmul.f32 %v659, %v659
    %v803 = vmul.f32 %v484, %v484
    %v804 = vmul.f32 %v662, %v662
    %v805 = vmul.f32 %v486, %v486
    %v806 = vmul.f32 %v664, %v664
    %v807 = vmul.f32 %v489, %v489
    %v808 = vmul.f32 %v667, %v667
    %v809 = vmul.f32 %v491, %v491
    %v810 = vmul.f32 %v669, %v669
    %v811 = vadd.f32 %v747, %v749
    %v812 = vadd.f32 %v811, %v751
    %v813 = vadd.f32 %v812, %v753
    %v814 = vadd.f32 %v813, %v755
    %v815 = vadd.f32 %v814, %v757
    %v816 = vadd.f32 %v815, %v759
    %v817 = vadd.f32 %v816, %v761
    %v818 = vadd.f32 %v817, %v763
    %v819 = vadd.f32 %v818, %v765
    %v820 = vadd.f32 %v819, %v767
    %v821 = vadd.f32 %v820, %v769
    %v822 = vadd.f32 %v821, %v771
    %v823 = vadd.f32 %v822, %v773
    %v824 = vadd.f32 %v823, %v775
    %v825 = vadd.f32 %v824, %v777
    %v826 = vadd.f32 %v825, %v779
    %v827 = vadd.f32 %v826, %v781
    %v828 = vadd.f32 %v827, %v783
    %v829 = vadd.f32 %v828, %v785
    %v830 = vadd.f32 %v829, %v787
    %v831 = vadd.f32 %v830, %v789
    %v832 = vadd.f32 %v831, %v791
    %v833 = vadd.f32 %v832, %v793
    %v834 = vadd.f32 %v833, %v795
    %v835 = vadd.f32 %v834, %v797
    %v836 = vadd.f32 %v835, %v799
    %v837 = vadd.f32 %v836, %v801
    %v838 = vadd.f32 %v837, %v803
    %v839 = vadd.f32 %v838, %v805
    %v840 = vadd.f32 %v839, %v807
    %v841 = vadd.f32 %v840, %v809
    %v842 = vrot.slane %v841, 4
    %v843 = vadd.f32 %v841, %v842
    %v844 = vrot.slane %v843, 2
    %v845 = vadd.f32 %v843, %v844
    %v846 = vrot.slane %v845, 1
    %v847 = vadd.f32 %v845, %v846
    %v848 = vadd.f32 %v748, %v750
    %v849 = vadd.f32 %v848, %v752
    %v850 = vadd.f32 %v849, %v754
    %v851 = vadd.f32 %v850, %v756
    %v852 = vadd.f32 %v851, %v758
    %v853 = vadd.f32 %v852, %v760
    %v854 = vadd.f32 %v853, %v762
    %v855 = vadd.f32 %v854, %v764
    %v856 = vadd.f32 %v855, %v766
    %v857 = vadd.f32 %v856, %v768
    %v858 = vadd.f32 %v857, %v770
    %v859 = vadd.f32 %v858, %v772
    %v860 = vadd.f32 %v859, %v774
    %v861 = vadd.f32 %v860, %v776
    %v862 = vadd.f32 %v861, %v778
    %v863 = vadd.f32 %v862, %v780
    %v864 = vadd.f32 %v863, %v782
    %v865 = vadd.f32 %v864, %v784
    %v866 = vadd.f32 %v865, %v786
    %v867 = vadd.f32 %v866, %v788
    %v868 = vadd.f32 %v867, %v790
    %v869 = vadd.f32 %v868, %v792
    %v870 = vadd.f32 %v869, %v794
    %v871 = vadd.f32 %v870, %v796
    %v872 = vadd.f32 %v871, %v798
    %v873 = vadd.f32 %v872, %v800
    %v874 = vadd.f32 %v873, %v802
    %v875 = vadd.f32 %v874, %v804
    %v876 = vadd.f32 %v875, %v806
    %v877 = vadd.f32 %v876, %v808
    %v878 = vadd.f32 %v877, %v810
    %v879 = vrot.slane %v878, 4
    %v880 = vadd.f32 %v878, %v879
    %v881 = vrot.slane %v880, 2
    %v882 = vadd.f32 %v880, %v881
    %v883 = vrot.slane %v882, 1
    %v884 = vadd.f32 %v882, %v883
    %v885 = vmul.f32 %v847, 0.00390625
    %v886 = vmul.f32 %v884, 0.00390625
    %v887 = vmul.f32 %v745, %v745
    %v888 = vmul.f32 %v746, %v746
    %v889 = vsub.f32 %v885, %v887
    %v890 = vsub.f32 %v886, %v888
    %v891 = vmax.f32 %v889, 0.0
    %v892 = vmax.f32 %v890, 0.0
    %v893 = vld [vmem:[%s3] sm:$0x3]
    %v894 = vadd.f32 %v891, 1e-05
    %v895 = vadd.f32 %v892, 1e-05
    %v896 = vrsqrt.pop %v894
    %v897 = vmul.f32 %v896, %v894
    %v898 = vmul.f32 %v897, %v896
    %v899 = vmul.f32 0.5, %v898
    %v900 = vsub.f32 1.5, %v899
    %v901 = vmul.f32 %v896, %v900
    %vm902 = vweird.f32 %v894
    %vm903 = vweird.f32 %v896
    %vm904 = vmor %vm902, %vm903
    %v905 = vsel %vm904, %v896, %v901
    %v906 = vrsqrt.pop %v895
    %v907 = vmul.f32 %v906, %v895
    %v908 = vmul.f32 %v907, %v906
    %v909 = vmul.f32 0.5, %v908
    %v910 = vsub.f32 1.5, %v909
    %v911 = vmul.f32 %v906, %v910
    %vm912 = vweird.f32 %v895
    %vm913 = vweird.f32 %v906
    %vm914 = vmor %vm912, %vm913
    %v915 = vsel %vm914, %v906, %v911
    %v918 = vrot.slane %v915, 7
    %vm919 = vcmask 1040384
    %v920 = vsel %vm919, %v905, %v918
    %v922 = vmul.f32 %v893, %v920
    %v923 = vld [vmem:[%s4] sm:$0x3]
    %v925 = vperm.slane %v922, 0
    %v926 = vperm.slane %v922, 1
    %v929 = vmul.f32 %v745, %v925
    %v930 = vmul.f32 %v746, %v926
    %v933 = vrot.slane %v930, 7
    %v934 = vsel %vm919, %v929, %v933
    %v936 = vsub.f32 %v923, %v934
    %v937 = vmul.f32 %v414, %v925
    %v938 = vmul.f32 %v592, %v926
    %v939 = vmul.f32 %v416, %v925
    %v940 = vmul.f32 %v594, %v926
    %v941 = vmul.f32 %v419, %v925
    %v942 = vmul.f32 %v597, %v926
    %v943 = vmul.f32 %v421, %v925
    %v944 = vmul.f32 %v599, %v926
    %v945 = vmul.f32 %v424, %v925
    %v946 = vmul.f32 %v602, %v926
    %v947 = vmul.f32 %v426, %v925
    %v948 = vmul.f32 %v604, %v926
    %v949 = vmul.f32 %v429, %v925
    %v950 = vmul.f32 %v607, %v926
    %v951 = vmul.f32 %v431, %v925
    %v952 = vmul.f32 %v609, %v926
    %v953 = vmul.f32 %v434, %v925
    %v954 = vmul.f32 %v612, %v926
    %v955 = vmul.f32 %v436, %v925
    %v956 = vmul.f32 %v614, %v926
    %v957 = vmul.f32 %v439, %v925
    %v958 = vmul.f32 %v617, %v926
    %v959 = vmul.f32 %v441, %v925
    %v960 = vmul.f32 %v619, %v926
    %v961 = vmul.f32 %v444, %v925
    %v962 = vmul.f32 %v622, %v926
    %v963 = vmul.f32 %v446, %v925
    %v964 = vmul.f32 %v624, %v926
    %v965 = vmul.f32 %v449, %v925
    %v966 = vmul.f32 %v627, %v926
    %v967 = vmul.f32 %v451, %v925
    %v968 = vmul.f32 %v629, %v926
    %v969 = vmul.f32 %v454, %v925
    %v970 = vmul.f32 %v632, %v926
    %v971 = vmul.f32 %v456, %v925
    %v972 = vmul.f32 %v634, %v926
    %v973 = vmul.f32 %v459, %v925
    %v974 = vmul.f32 %v637, %v926
    %v975 = vmul.f32 %v461, %v925
    %v976 = vmul.f32 %v639, %v926
    %v977 = vmul.f32 %v464, %v925
    %v978 = vmul.f32 %v642, %v926
    %v979 = vmul.f32 %v466, %v925
    %v980 = vmul.f32 %v644, %v926
    %v981 = vmul.f32 %v469, %v925
    %v982 = vmul.f32 %v647, %v926
    %v983 = vmul.f32 %v471, %v925
    %v984 = vmul.f32 %v649, %v926
    %v985 = vmul.f32 %v474, %v925
    %v986 = vmul.f32 %v652, %v926
    %v987 = vmul.f32 %v476, %v925
    %v988 = vmul.f32 %v654, %v926
    %v989 = vmul.f32 %v479, %v925
    %v990 = vmul.f32 %v657, %v926
    %v991 = vmul.f32 %v481, %v925
    %v992 = vmul.f32 %v659, %v926
    %v993 = vmul.f32 %v484, %v925
    %v994 = vmul.f32 %v662, %v926
    %v995 = vmul.f32 %v486, %v925
    %v996 = vmul.f32 %v664, %v926
    %v997 = vmul.f32 %v489, %v925
    %v998 = vmul.f32 %v667, %v926
    %v999 = vmul.f32 %v491, %v925
    %v1000 = vmul.f32 %v669, %v926
    %v1002 = vperm.slane %v936, 0
    %v1003 = vperm.slane %v936, 1
    %v1006 = vadd.f32 %v937, %v1002
    %v1007 = vadd.f32 %v938, %v1003
    %v1008 = vadd.f32 %v939, %v1002
    %v1009 = vadd.f32 %v940, %v1003
    %v1010 = vadd.f32 %v941, %v1002
    %v1011 = vadd.f32 %v942, %v1003
    %v1012 = vadd.f32 %v943, %v1002
    %v1013 = vadd.f32 %v944, %v1003
    %v1014 = vadd.f32 %v945, %v1002
    %v1015 = vadd.f32 %v946, %v1003
    %v1016 = vadd.f32 %v947, %v1002
    %v1017 = vadd.f32 %v948, %v1003
    %v1018 = vadd.f32 %v949, %v1002
    %v1019 = vadd.f32 %v950, %v1003
    %v1020 = vadd.f32 %v951, %v1002
    %v1021 = vadd.f32 %v952, %v1003
    %v1022 = vadd.f32 %v953, %v1002
    %v1023 = vadd.f32 %v954, %v1003
    %v1024 = vadd.f32 %v955, %v1002
    %v1025 = vadd.f32 %v956, %v1003
    %v1026 = vadd.f32 %v957, %v1002
    %v1027 = vadd.f32 %v958, %v1003
    %v1028 = vadd.f32 %v959, %v1002
    %v1029 = vadd.f32 %v960, %v1003
    %v1030 = vadd.f32 %v961, %v1002
    %v1031 = vadd.f32 %v962, %v1003
    %v1032 = vadd.f32 %v963, %v1002
    %v1033 = vadd.f32 %v964, %v1003
    %v1034 = vadd.f32 %v965, %v1002
    %v1035 = vadd.f32 %v966, %v1003
    %v1036 = vadd.f32 %v967, %v1002
    %v1037 = vadd.f32 %v968, %v1003
    %v1038 = vadd.f32 %v969, %v1002
    %v1039 = vadd.f32 %v970, %v1003
    %v1040 = vadd.f32 %v971, %v1002
    %v1041 = vadd.f32 %v972, %v1003
    %v1042 = vadd.f32 %v973, %v1002
    %v1043 = vadd.f32 %v974, %v1003
    %v1044 = vadd.f32 %v975, %v1002
    %v1045 = vadd.f32 %v976, %v1003
    %v1046 = vadd.f32 %v977, %v1002
    %v1047 = vadd.f32 %v978, %v1003
    %v1048 = vadd.f32 %v979, %v1002
    %v1049 = vadd.f32 %v980, %v1003
    %v1050 = vadd.f32 %v981, %v1002
    %v1051 = vadd.f32 %v982, %v1003
    %v1052 = vadd.f32 %v983, %v1002
    %v1053 = vadd.f32 %v984, %v1003
    %v1054 = vadd.f32 %v985, %v1002
    %v1055 = vadd.f32 %v986, %v1003
    %v1056 = vadd.f32 %v987, %v1002
    %v1057 = vadd.f32 %v988, %v1003
    %v1058 = vadd.f32 %v989, %v1002
    %v1059 = vadd.f32 %v990, %v1003
    %v1060 = vadd.f32 %v991, %v1002
    %v1061 = vadd.f32 %v992, %v1003
    %v1062 = vadd.f32 %v993, %v1002
    %v1063 = vadd.f32 %v994, %v1003
    %v1064 = vadd.f32 %v995, %v1002
    %v1065 = vadd.f32 %v996, %v1003
    %v1066 = vadd.f32 %v997, %v1002
    %v1067 = vadd.f32 %v998, %v1003
    %v1068 = vadd.f32 %v999, %v1002
    %v1069 = vadd.f32 %v1000, %v1003
    %v1070 = vmax.f32 %v1006, 0.0
    %v1071 = vmax.f32 %v1007, 0.0
    %v1072 = vmax.f32 %v1008, 0.0
    %v1073 = vmax.f32 %v1009, 0.0
    %v1074 = vmax.f32 %v1010, 0.0
    %v1075 = vmax.f32 %v1011, 0.0
    %v1076 = vmax.f32 %v1012, 0.0
    %v1077 = vmax.f32 %v1013, 0.0
    %v1078 = vmax.f32 %v1014, 0.0
    %v1079 = vmax.f32 %v1015, 0.0
    %v1080 = vmax.f32 %v1016, 0.0
    %v1081 = vmax.f32 %v1017, 0.0
    %v1082 = vmax.f32 %v1018, 0.0
    %v1083 = vmax.f32 %v1019, 0.0
    %v1084 = vmax.f32 %v1020, 0.0
    %v1085 = vmax.f32 %v1021, 0.0
    %v1086 = vmax.f32 %v1022, 0.0
    %v1087 = vmax.f32 %v1023, 0.0
    %v1088 = vmax.f32 %v1024, 0.0
    %v1089 = vmax.f32 %v1025, 0.0
    %v1090 = vmax.f32 %v1026, 0.0
    %v1091 = vmax.f32 %v1027, 0.0
    %v1092 = vmax.f32 %v1028, 0.0
    %v1093 = vmax.f32 %v1029, 0.0
    %v1094 = vmax.f32 %v1030, 0.0
    %v1095 = vmax.f32 %v1031, 0.0
    %v1096 = vmax.f32 %v1032, 0.0
    %v1097 = vmax.f32 %v1033, 0.0
    %v1098 = vmax.f32 %v1034, 0.0
    %v1099 = vmax.f32 %v1035, 0.0
    %v1100 = vmax.f32 %v1036, 0.0
    %v1101 = vmax.f32 %v1037, 0.0
    %v1102 = vmax.f32 %v1038, 0.0
    %v1103 = vmax.f32 %v1039, 0.0
    %v1104 = vmax.f32 %v1040, 0.0
    %v1105 = vmax.f32 %v1041, 0.0
    %v1106 = vmax.f32 %v1042, 0.0
    %v1107 = vmax.f32 %v1043, 0.0
    %v1108 = vmax.f32 %v1044, 0.0
    %v1109 = vmax.f32 %v1045, 0.0
    %v1110 = vmax.f32 %v1046, 0.0
    %v1111 = vmax.f32 %v1047, 0.0
    %v1112 = vmax.f32 %v1048, 0.0
    %v1113 = vmax.f32 %v1049, 0.0
    %v1114 = vmax.f32 %v1050, 0.0
    %v1115 = vmax.f32 %v1051, 0.0
    %v1116 = vmax.f32 %v1052, 0.0
    %v1117 = vmax.f32 %v1053, 0.0
    %v1118 = vmax.f32 %v1054, 0.0
    %v1119 = vmax.f32 %v1055, 0.0
    %v1120 = vmax.f32 %v1056, 0.0
    %v1121 = vmax.f32 %v1057, 0.0
    %v1122 = vmax.f32 %v1058, 0.0
    %v1123 = vmax.f32 %v1059, 0.0
    %v1124 = vmax.f32 %v1060, 0.0
    %v1125 = vmax.f32 %v1061, 0.0
    %v1126 = vmax.f32 %v1062, 0.0
    %v1127 = vmax.f32 %v1063, 0.0
    %v1128 = vmax.f32 %v1064, 0.0
    %v1129 = vmax.f32 %v1065, 0.0
    %v1130 = vmax.f32 %v1066, 0.0
    %v1131 = vmax.f32 %v1067, 0.0
    %v1132 = vmax.f32 %v1068, 0.0
    %v1133 = vmax.f32 %v1069, 0.0
    %v1134 = vpack.c.bf16 %v1072, %v1070
    %v1135 = vpack.c.bf16 %v1073, %v1071
    %v1136 = vpack.c.bf16 %v1076, %v1074
    %v1137 = vpack.c.bf16 %v1077, %v1075
    %v1138 = vpack.c.bf16 %v1080, %v1078
    %v1139 = vpack.c.bf16 %v1081, %v1079
    %v1140 = vpack.c.bf16 %v1084, %v1082
    %v1141 = vpack.c.bf16 %v1085, %v1083
    %v1142 = vpack.c.bf16 %v1088, %v1086
    %v1143 = vpack.c.bf16 %v1089, %v1087
    %v1144 = vpack.c.bf16 %v1092, %v1090
    %v1145 = vpack.c.bf16 %v1093, %v1091
    %v1146 = vpack.c.bf16 %v1096, %v1094
    %v1147 = vpack.c.bf16 %v1097, %v1095
    %v1148 = vpack.c.bf16 %v1100, %v1098
    %v1149 = vpack.c.bf16 %v1101, %v1099
    %v1150 = vpack.c.bf16 %v1104, %v1102
    %v1151 = vpack.c.bf16 %v1105, %v1103
    %v1152 = vpack.c.bf16 %v1108, %v1106
    %v1153 = vpack.c.bf16 %v1109, %v1107
    %v1154 = vpack.c.bf16 %v1112, %v1110
    %v1155 = vpack.c.bf16 %v1113, %v1111
    %v1156 = vpack.c.bf16 %v1116, %v1114
    %v1157 = vpack.c.bf16 %v1117, %v1115
    %v1158 = vpack.c.bf16 %v1120, %v1118
    %v1159 = vpack.c.bf16 %v1121, %v1119
    %v1160 = vpack.c.bf16 %v1124, %v1122
    %v1161 = vpack.c.bf16 %v1125, %v1123
    %v1162 = vpack.c.bf16 %v1128, %v1126
    %v1163 = vpack.c.bf16 %v1129, %v1127
    %v1164 = vpack.c.bf16 %v1132, %v1130
    %v1165 = vpack.c.bf16 %v1133, %v1131
    %v1166 = vld [vmem:[%s2] sm:$0xff]
    %v1167 = vld [vmem:[%s2 + $0x8] sm:$0xff]
    %v1168 = vld [vmem:[%s2 + $0x10] sm:$0xff]
    %v1169 = vld [vmem:[%s2 + $0x18] sm:$0xff]
    %v1170 = vld [vmem:[%s2 + $0x20] sm:$0xff]
    %v1171 = vld [vmem:[%s2 + $0x28] sm:$0xff]
    %v1172 = vld [vmem:[%s2 + $0x30] sm:$0xff]
    %v1173 = vld [vmem:[%s2 + $0x38] sm:$0xff]
    %v1174 = vld [vmem:[%s2 + $0x40] sm:$0xff]
    %v1175 = vld [vmem:[%s2 + $0x48] sm:$0xff]
    %v1176 = vld [vmem:[%s2 + $0x50] sm:$0xff]
    %v1177 = vld [vmem:[%s2 + $0x58] sm:$0xff]
    %v1178 = vld [vmem:[%s2 + $0x60] sm:$0xff]
    %v1179 = vld [vmem:[%s2 + $0x68] sm:$0xff]
    %v1180 = vld [vmem:[%s2 + $0x70] sm:$0xff]
    %v1181 = vld [vmem:[%s2 + $0x78] sm:$0xff]
    %v1182 = vld [vmem:[%s2 + $0x80] sm:$0xff]
    %v1183 = vld [vmem:[%s2 + $0x88] sm:$0xff]
    %v1184 = vld [vmem:[%s2 + $0x90] sm:$0xff]
    %v1185 = vld [vmem:[%s2 + $0x98] sm:$0xff]
    %v1186 = vld [vmem:[%s2 + $0xa0] sm:$0xff]
    %v1187 = vld [vmem:[%s2 + $0xa8] sm:$0xff]
    %v1188 = vld [vmem:[%s2 + $0xb0] sm:$0xff]
    %v1189 = vld [vmem:[%s2 + $0xb8] sm:$0xff]
    %v1190 = vld [vmem:[%s2 + $0xc0] sm:$0xff]
    %v1191 = vld [vmem:[%s2 + $0xc8] sm:$0xff]
    %v1192 = vld [vmem:[%s2 + $0xd0] sm:$0xff]
    %v1193 = vld [vmem:[%s2 + $0xd8] sm:$0xff]
    %v1194 = vld [vmem:[%s2 + $0xe0] sm:$0xff]
    %v1195 = vld [vmem:[%s2 + $0xe8] sm:$0xff]
    %v1196 = vld [vmem:[%s2 + $0xf0] sm:$0xff]
    %v1197 = vld [vmem:[%s2 + $0xf8] sm:$0xff]
    %v1230 = vunpack.c.l.b16 %v1166
    %v1231 = vunpack.c.h.b16 %v1166
    %v1232 = vunpack.c.l.b16 %v1167
    %v1233 = vunpack.c.h.b16 %v1167
    %v1234 = vunpack.c.l.b16 %v1168
    %v1235 = vunpack.c.h.b16 %v1168
    %v1236 = vunpack.c.l.b16 %v1169
    %v1237 = vunpack.c.h.b16 %v1169
    %v1238 = vunpack.c.l.b16 %v1170
    %v1239 = vunpack.c.h.b16 %v1170
    %v1240 = vunpack.c.l.b16 %v1171
    %v1241 = vunpack.c.h.b16 %v1171
    %v1242 = vunpack.c.l.b16 %v1172
    %v1243 = vunpack.c.h.b16 %v1172
    %v1244 = vunpack.c.l.b16 %v1173
    %v1245 = vunpack.c.h.b16 %v1173
    %v1246 = vunpack.c.l.b16 %v1174
    %v1247 = vunpack.c.h.b16 %v1174
    %v1248 = vunpack.c.l.b16 %v1175
    %v1249 = vunpack.c.h.b16 %v1175
    %v1250 = vunpack.c.l.b16 %v1176
    %v1251 = vunpack.c.h.b16 %v1176
    %v1252 = vunpack.c.l.b16 %v1177
    %v1253 = vunpack.c.h.b16 %v1177
    %v1254 = vunpack.c.l.b16 %v1178
    %v1255 = vunpack.c.h.b16 %v1178
    %v1256 = vunpack.c.l.b16 %v1179
    %v1257 = vunpack.c.h.b16 %v1179
    %v1258 = vunpack.c.l.b16 %v1180
    %v1259 = vunpack.c.h.b16 %v1180
    %v1260 = vunpack.c.l.b16 %v1181
    %v1261 = vunpack.c.h.b16 %v1181
    %v1262 = vunpack.c.l.b16 %v1182
    %v1263 = vunpack.c.h.b16 %v1182
    %v1264 = vunpack.c.l.b16 %v1183
    %v1265 = vunpack.c.h.b16 %v1183
    %v1266 = vunpack.c.l.b16 %v1184
    %v1267 = vunpack.c.h.b16 %v1184
    %v1268 = vunpack.c.l.b16 %v1185
    %v1269 = vunpack.c.h.b16 %v1185
    %v1270 = vunpack.c.l.b16 %v1186
    %v1271 = vunpack.c.h.b16 %v1186
    %v1272 = vunpack.c.l.b16 %v1187
    %v1273 = vunpack.c.h.b16 %v1187
    %v1274 = vunpack.c.l.b16 %v1188
    %v1275 = vunpack.c.h.b16 %v1188
    %v1276 = vunpack.c.l.b16 %v1189
    %v1277 = vunpack.c.h.b16 %v1189
    %v1278 = vunpack.c.l.b16 %v1190
    %v1279 = vunpack.c.h.b16 %v1190
    %v1280 = vunpack.c.l.b16 %v1191
    %v1281 = vunpack.c.h.b16 %v1191
    %v1282 = vunpack.c.l.b16 %v1192
    %v1283 = vunpack.c.h.b16 %v1192
    %v1284 = vunpack.c.l.b16 %v1193
    %v1285 = vunpack.c.h.b16 %v1193
    %v1286 = vunpack.c.l.b16 %v1194
    %v1287 = vunpack.c.h.b16 %v1194
    %v1288 = vunpack.c.l.b16 %v1195
    %v1289 = vunpack.c.h.b16 %v1195
    %v1290 = vunpack.c.l.b16 %v1196
    %v1291 = vunpack.c.h.b16 %v1196
    %v1292 = vunpack.c.l.b16 %v1197
    %v1293 = vunpack.c.h.b16 %v1197
    %v1294 = vpack.c.b16 %v1232, %v1230
    %v1295 = vpack.c.b16 %v1233, %v1231
    %v1296 = vpack.c.b16 %v1236, %v1234
    %v1297 = vpack.c.b16 %v1237, %v1235
    %v1298 = vpack.c.b16 %v1240, %v1238
    %v1299 = vpack.c.b16 %v1241, %v1239
    %v1300 = vpack.c.b16 %v1244, %v1242
    %v1301 = vpack.c.b16 %v1245, %v1243
    %v1302 = vpack.c.b16 %v1248, %v1246
    %v1303 = vpack.c.b16 %v1249, %v1247
    %v1304 = vpack.c.b16 %v1252, %v1250
    %v1305 = vpack.c.b16 %v1253, %v1251
    %v1306 = vpack.c.b16 %v1256, %v1254
    %v1307 = vpack.c.b16 %v1257, %v1255
    %v1308 = vpack.c.b16 %v1260, %v1258
    %v1309 = vpack.c.b16 %v1261, %v1259
    %v1310 = vpack.c.b16 %v1264, %v1262
    %v1311 = vpack.c.b16 %v1265, %v1263
    %v1312 = vpack.c.b16 %v1268, %v1266
    %v1313 = vpack.c.b16 %v1269, %v1267
    %v1314 = vpack.c.b16 %v1272, %v1270
    %v1315 = vpack.c.b16 %v1273, %v1271
    %v1316 = vpack.c.b16 %v1276, %v1274
    %v1317 = vpack.c.b16 %v1277, %v1275
    %v1318 = vpack.c.b16 %v1280, %v1278
    %v1319 = vpack.c.b16 %v1281, %v1279
    %v1320 = vpack.c.b16 %v1284, %v1282
    %v1321 = vpack.c.b16 %v1285, %v1283
    %v1322 = vpack.c.b16 %v1288, %v1286
    %v1323 = vpack.c.b16 %v1289, %v1287
    %v1324 = vpack.c.b16 %v1292, %v1290
    %v1325 = vpack.c.b16 %v1293, %v1291
    %1358 = vmatpush.bf16.msra.mxu0 %v1308
    %1359 = vmatpush.bf16.msra.mxu0 %v1306
    %1360 = vmatpush.bf16.msra.mxu0 %v1304
    %1361 = vmatpush.bf16.msra.mxu0 %v1302
    %1362 = vmatpush.bf16.msra.mxu0 %v1300
    %1363 = vmatpush.bf16.msra.mxu0 %v1298
    %1364 = vmatpush.bf16.msra.mxu0 %v1296
    %1365 = vmatpush.bf16.msra.mxu0 %v1294
    %1366 = vmatmul.bf16.gmra.mxu0 %v1134
    %v1367 = vpop.f32.mrf.mxu0
    %v1368 = vadd.f32 0.0, %v1367
    %v1369 = vpop.f32.mrf.mxu0
    %v1370 = vadd.f32 0.0, %v1369
    %1371 = vmatmul.bf16.gmra.mxu0 %v1136
    %v1372 = vpop.f32.mrf.mxu0
    %v1373 = vadd.f32 0.0, %v1372
    %v1374 = vpop.f32.mrf.mxu0
    %v1375 = vadd.f32 0.0, %v1374
    %1376 = vmatmul.bf16.gmra.mxu0 %v1138
    %v1377 = vpop.f32.mrf.mxu0
    %v1378 = vadd.f32 0.0, %v1377
    %v1379 = vpop.f32.mrf.mxu0
    %v1380 = vadd.f32 0.0, %v1379
    %1381 = vmatmul.bf16.gmra.mxu0 %v1140
    %v1382 = vpop.f32.mrf.mxu0
    %v1383 = vadd.f32 0.0, %v1382
    %v1384 = vpop.f32.mrf.mxu0
    %v1385 = vadd.f32 0.0, %v1384
    %1386 = vmatmul.bf16.gmra.mxu0 %v1142
    %v1387 = vpop.f32.mrf.mxu0
    %v1388 = vadd.f32 0.0, %v1387
    %v1389 = vpop.f32.mrf.mxu0
    %v1390 = vadd.f32 0.0, %v1389
    %1391 = vmatmul.bf16.gmra.mxu0 %v1144
    %v1392 = vpop.f32.mrf.mxu0
    %v1393 = vadd.f32 0.0, %v1392
    %v1394 = vpop.f32.mrf.mxu0
    %v1395 = vadd.f32 0.0, %v1394
    %1396 = vmatmul.bf16.gmra.mxu0 %v1146
    %v1397 = vpop.f32.mrf.mxu0
    %v1398 = vadd.f32 0.0, %v1397
    %v1399 = vpop.f32.mrf.mxu0
    %v1400 = vadd.f32 0.0, %v1399
    %1401 = vmatmul.bf16.gmra.mxu0 %v1148
    %v1402 = vpop.f32.mrf.mxu0
    %v1403 = vadd.f32 0.0, %v1402
    %v1404 = vpop.f32.mrf.mxu0
    %v1405 = vadd.f32 0.0, %v1404
    %1406 = vmatmul.bf16.gmra.mxu0 %v1150
    %v1407 = vpop.f32.mrf.mxu0
    %v1408 = vadd.f32 0.0, %v1407
    %v1409 = vpop.f32.mrf.mxu0
    %v1410 = vadd.f32 0.0, %v1409
    %1411 = vmatmul.bf16.gmra.mxu0 %v1152
    %v1412 = vpop.f32.mrf.mxu0
    %v1413 = vadd.f32 0.0, %v1412
    %v1414 = vpop.f32.mrf.mxu0
    %v1415 = vadd.f32 0.0, %v1414
    %1416 = vmatmul.bf16.gmra.mxu0 %v1154
    %v1417 = vpop.f32.mrf.mxu0
    %v1418 = vadd.f32 0.0, %v1417
    %v1419 = vpop.f32.mrf.mxu0
    %v1420 = vadd.f32 0.0, %v1419
    %1421 = vmatmul.bf16.gmra.mxu0 %v1156
    %v1422 = vpop.f32.mrf.mxu0
    %v1423 = vadd.f32 0.0, %v1422
    %v1424 = vpop.f32.mrf.mxu0
    %v1425 = vadd.f32 0.0, %v1424
    %1426 = vmatmul.bf16.gmra.mxu0 %v1158
    %v1427 = vpop.f32.mrf.mxu0
    %v1428 = vadd.f32 0.0, %v1427
    %v1429 = vpop.f32.mrf.mxu0
    %v1430 = vadd.f32 0.0, %v1429
    %1431 = vmatmul.bf16.gmra.mxu0 %v1160
    %v1432 = vpop.f32.mrf.mxu0
    %v1433 = vadd.f32 0.0, %v1432
    %v1434 = vpop.f32.mrf.mxu0
    %v1435 = vadd.f32 0.0, %v1434
    %1436 = vmatmul.bf16.gmra.mxu0 %v1162
    %v1437 = vpop.f32.mrf.mxu0
    %v1438 = vadd.f32 0.0, %v1437
    %v1439 = vpop.f32.mrf.mxu0
    %v1440 = vadd.f32 0.0, %v1439
    %1441 = vmatmul.bf16.gmra.mxu0 %v1164
    %v1442 = vpop.f32.mrf.mxu0
    %v1443 = vadd.f32 0.0, %v1442
    %v1444 = vpop.f32.mrf.mxu0
    %v1445 = vadd.f32 0.0, %v1444
    %1446 = vdwg.mxu0
    %1447 = vmatpush.bf16.msra.mxu0 %v1324
    %1448 = vmatpush.bf16.msra.mxu0 %v1322
    %1449 = vmatpush.bf16.msra.mxu0 %v1320
    %1450 = vmatpush.bf16.msra.mxu0 %v1318
    %1451 = vmatpush.bf16.msra.mxu0 %v1316
    %1452 = vmatpush.bf16.msra.mxu0 %v1314
    %1453 = vmatpush.bf16.msra.mxu0 %v1312
    %1454 = vmatpush.bf16.msra.mxu0 %v1310
    %1455 = vmatmul.bf16.gmra.mxu0 %v1135
    %v1456 = vpop.f32.mrf.mxu0
    %v1457 = vadd.f32 %v1368, %v1456
    %v1458 = vpop.f32.mrf.mxu0
    %v1459 = vadd.f32 %v1370, %v1458
    %1460 = vmatmul.bf16.gmra.mxu0 %v1137
    %v1461 = vpop.f32.mrf.mxu0
    %v1462 = vadd.f32 %v1373, %v1461
    %v1463 = vpop.f32.mrf.mxu0
    %v1464 = vadd.f32 %v1375, %v1463
    %1465 = vmatmul.bf16.gmra.mxu0 %v1139
    %v1466 = vpop.f32.mrf.mxu0
    %v1467 = vadd.f32 %v1378, %v1466
    %v1468 = vpop.f32.mrf.mxu0
    %v1469 = vadd.f32 %v1380, %v1468
    %1470 = vmatmul.bf16.gmra.mxu0 %v1141
    %v1471 = vpop.f32.mrf.mxu0
    %v1472 = vadd.f32 %v1383, %v1471
    %v1473 = vpop.f32.mrf.mxu0
    %v1474 = vadd.f32 %v1385, %v1473
    %1475 = vmatmul.bf16.gmra.mxu0 %v1143
    %v1476 = vpop.f32.mrf.mxu0
    %v1477 = vadd.f32 %v1388, %v1476
    %v1478 = vpop.f32.mrf.mxu0
    %v1479 = vadd.f32 %v1390, %v1478
    %1480 = vmatmul.bf16.gmra.mxu0 %v1145
    %v1481 = vpop.f32.mrf.mxu0
    %v1482 = vadd.f32 %v1393, %v1481
    %v1483 = vpop.f32.mrf.mxu0
    %v1484 = vadd.f32 %v1395, %v1483
    %1485 = vmatmul.bf16.gmra.mxu0 %v1147
    %v1486 = vpop.f32.mrf.mxu0
    %v1487 = vadd.f32 %v1398, %v1486
    %v1488 = vpop.f32.mrf.mxu0
    %v1489 = vadd.f32 %v1400, %v1488
    %1490 = vmatmul.bf16.gmra.mxu0 %v1149
    %v1491 = vpop.f32.mrf.mxu0
    %v1492 = vadd.f32 %v1403, %v1491
    %v1493 = vpop.f32.mrf.mxu0
    %v1494 = vadd.f32 %v1405, %v1493
    %1495 = vmatmul.bf16.gmra.mxu0 %v1151
    %v1496 = vpop.f32.mrf.mxu0
    %v1497 = vadd.f32 %v1408, %v1496
    %v1498 = vpop.f32.mrf.mxu0
    %v1499 = vadd.f32 %v1410, %v1498
    %1500 = vmatmul.bf16.gmra.mxu0 %v1153
    %v1501 = vpop.f32.mrf.mxu0
    %v1502 = vadd.f32 %v1413, %v1501
    %v1503 = vpop.f32.mrf.mxu0
    %v1504 = vadd.f32 %v1415, %v1503
    %1505 = vmatmul.bf16.gmra.mxu0 %v1155
    %v1506 = vpop.f32.mrf.mxu0
    %v1507 = vadd.f32 %v1418, %v1506
    %v1508 = vpop.f32.mrf.mxu0
    %v1509 = vadd.f32 %v1420, %v1508
    %1510 = vmatmul.bf16.gmra.mxu0 %v1157
    %v1511 = vpop.f32.mrf.mxu0
    %v1512 = vadd.f32 %v1423, %v1511
    %v1513 = vpop.f32.mrf.mxu0
    %v1514 = vadd.f32 %v1425, %v1513
    %1515 = vmatmul.bf16.gmra.mxu0 %v1159
    %v1516 = vpop.f32.mrf.mxu0
    %v1517 = vadd.f32 %v1428, %v1516
    %v1518 = vpop.f32.mrf.mxu0
    %v1519 = vadd.f32 %v1430, %v1518
    %1520 = vmatmul.bf16.gmra.mxu0 %v1161
    %v1521 = vpop.f32.mrf.mxu0
    %v1522 = vadd.f32 %v1433, %v1521
    %v1523 = vpop.f32.mrf.mxu0
    %v1524 = vadd.f32 %v1435, %v1523
    %1525 = vmatmul.bf16.gmra.mxu0 %v1163
    %v1526 = vpop.f32.mrf.mxu0
    %v1527 = vadd.f32 %v1438, %v1526
    %v1528 = vpop.f32.mrf.mxu0
    %v1529 = vadd.f32 %v1440, %v1528
    %1530 = vmatmul.bf16.gmra.mxu0 %v1165
    %v1531 = vpop.f32.mrf.mxu0
    %v1532 = vadd.f32 %v1443, %v1531
    %v1533 = vpop.f32.mrf.mxu0
    %v1534 = vadd.f32 %v1445, %v1533
    %1535 = vdwg.mxu0
    %1536 = vmatpush.bf16.msra.mxu0 %v1309
    %1537 = vmatpush.bf16.msra.mxu0 %v1307
    %1538 = vmatpush.bf16.msra.mxu0 %v1305
    %1539 = vmatpush.bf16.msra.mxu0 %v1303
    %1540 = vmatpush.bf16.msra.mxu0 %v1301
    %1541 = vmatpush.bf16.msra.mxu0 %v1299
    %1542 = vmatpush.bf16.msra.mxu0 %v1297
    %1543 = vmatpush.bf16.msra.mxu0 %v1295
    %1544 = vmatmul.bf16.gmra.mxu0 %v1134
    %v1545 = vpop.f32.mrf.mxu0
    %v1546 = vadd.f32 0.0, %v1545
    %v1547 = vpop.f32.mrf.mxu0
    %v1548 = vadd.f32 0.0, %v1547
    %1549 = vmatmul.bf16.gmra.mxu0 %v1136
    %v1550 = vpop.f32.mrf.mxu0
    %v1551 = vadd.f32 0.0, %v1550
    %v1552 = vpop.f32.mrf.mxu0
    %v1553 = vadd.f32 0.0, %v1552
    %1554 = vmatmul.bf16.gmra.mxu0 %v1138
    %v1555 = vpop.f32.mrf.mxu0
    %v1556 = vadd.f32 0.0, %v1555
    %v1557 = vpop.f32.mrf.mxu0
    %v1558 = vadd.f32 0.0, %v1557
    %1559 = vmatmul.bf16.gmra.mxu0 %v1140
    %v1560 = vpop.f32.mrf.mxu0
    %v1561 = vadd.f32 0.0, %v1560
    %v1562 = vpop.f32.mrf.mxu0
    %v1563 = vadd.f32 0.0, %v1562
    %1564 = vmatmul.bf16.gmra.mxu0 %v1142
    %v1565 = vpop.f32.mrf.mxu0
    %v1566 = vadd.f32 0.0, %v1565
    %v1567 = vpop.f32.mrf.mxu0
    %v1568 = vadd.f32 0.0, %v1567
    %1569 = vmatmul.bf16.gmra.mxu0 %v1144
    %v1570 = vpop.f32.mrf.mxu0
    %v1571 = vadd.f32 0.0, %v1570
    %v1572 = vpop.f32.mrf.mxu0
    %v1573 = vadd.f32 0.0, %v1572
    %1574 = vmatmul.bf16.gmra.mxu0 %v1146
    %v1575 = vpop.f32.mrf.mxu0
    %v1576 = vadd.f32 0.0, %v1575
    %v1577 = vpop.f32.mrf.mxu0
    %v1578 = vadd.f32 0.0, %v1577
    %1579 = vmatmul.bf16.gmra.mxu0 %v1148
    %v1580 = vpop.f32.mrf.mxu0
    %v1581 = vadd.f32 0.0, %v1580
    %v1582 = vpop.f32.mrf.mxu0
    %v1583 = vadd.f32 0.0, %v1582
    %1584 = vmatmul.bf16.gmra.mxu0 %v1150
    %v1585 = vpop.f32.mrf.mxu0
    %v1586 = vadd.f32 0.0, %v1585
    %v1587 = vpop.f32.mrf.mxu0
    %v1588 = vadd.f32 0.0, %v1587
    %1589 = vmatmul.bf16.gmra.mxu0 %v1152
    %v1590 = vpop.f32.mrf.mxu0
    %v1591 = vadd.f32 0.0, %v1590
    %v1592 = vpop.f32.mrf.mxu0
    %v1593 = vadd.f32 0.0, %v1592
    %1594 = vmatmul.bf16.gmra.mxu0 %v1154
    %v1595 = vpop.f32.mrf.mxu0
    %v1596 = vadd.f32 0.0, %v1595
    %v1597 = vpop.f32.mrf.mxu0
    %v1598 = vadd.f32 0.0, %v1597
    %1599 = vmatmul.bf16.gmra.mxu0 %v1156
    %v1600 = vpop.f32.mrf.mxu0
    %v1601 = vadd.f32 0.0, %v1600
    %v1602 = vpop.f32.mrf.mxu0
    %v1603 = vadd.f32 0.0, %v1602
    %1604 = vmatmul.bf16.gmra.mxu0 %v1158
    %v1605 = vpop.f32.mrf.mxu0
    %v1606 = vadd.f32 0.0, %v1605
    %v1607 = vpop.f32.mrf.mxu0
    %v1608 = vadd.f32 0.0, %v1607
    %1609 = vmatmul.bf16.gmra.mxu0 %v1160
    %v1610 = vpop.f32.mrf.mxu0
    %v1611 = vadd.f32 0.0, %v1610
    %v1612 = vpop.f32.mrf.mxu0
    %v1613 = vadd.f32 0.0, %v1612
    %1614 = vmatmul.bf16.gmra.mxu0 %v1162
    %v1615 = vpop.f32.mrf.mxu0
    %v1616 = vadd.f32 0.0, %v1615
    %v1617 = vpop.f32.mrf.mxu0
    %v1618 = vadd.f32 0.0, %v1617
    %1619 = vmatmul.bf16.gmra.mxu0 %v1164
    %v1620 = vpop.f32.mrf.mxu0
    %v1621 = vadd.f32 0.0, %v1620
    %v1622 = vpop.f32.mrf.mxu0
    %v1623 = vadd.f32 0.0, %v1622
    %1624 = vdwg.mxu0
    %1625 = vmatpush.bf16.msra.mxu0 %v1325
    %1626 = vmatpush.bf16.msra.mxu0 %v1323
    %1627 = vmatpush.bf16.msra.mxu0 %v1321
    %1628 = vmatpush.bf16.msra.mxu0 %v1319
    %1629 = vmatpush.bf16.msra.mxu0 %v1317
    %1630 = vmatpush.bf16.msra.mxu0 %v1315
    %1631 = vmatpush.bf16.msra.mxu0 %v1313
    %1632 = vmatpush.bf16.msra.mxu0 %v1311
    %1633 = vmatmul.bf16.gmra.mxu0 %v1135
    %v1634 = vpop.f32.mrf.mxu0
    %v1635 = vadd.f32 %v1546, %v1634
    %v1636 = vpop.f32.mrf.mxu0
    %v1637 = vadd.f32 %v1548, %v1636
    %1638 = vmatmul.bf16.gmra.mxu0 %v1137
    %v1639 = vpop.f32.mrf.mxu0
    %v1640 = vadd.f32 %v1551, %v1639
    %v1641 = vpop.f32.mrf.mxu0
    %v1642 = vadd.f32 %v1553, %v1641
    %1643 = vmatmul.bf16.gmra.mxu0 %v1139
    %v1644 = vpop.f32.mrf.mxu0
    %v1645 = vadd.f32 %v1556, %v1644
    %v1646 = vpop.f32.mrf.mxu0
    %v1647 = vadd.f32 %v1558, %v1646
    %1648 = vmatmul.bf16.gmra.mxu0 %v1141
    %v1649 = vpop.f32.mrf.mxu0
    %v1650 = vadd.f32 %v1561, %v1649
    %v1651 = vpop.f32.mrf.mxu0
    %v1652 = vadd.f32 %v1563, %v1651
    %1653 = vmatmul.bf16.gmra.mxu0 %v1143
    %v1654 = vpop.f32.mrf.mxu0
    %v1655 = vadd.f32 %v1566, %v1654
    %v1656 = vpop.f32.mrf.mxu0
    %v1657 = vadd.f32 %v1568, %v1656
    %1658 = vmatmul.bf16.gmra.mxu0 %v1145
    %v1659 = vpop.f32.mrf.mxu0
    %v1660 = vadd.f32 %v1571, %v1659
    %v1661 = vpop.f32.mrf.mxu0
    %v1662 = vadd.f32 %v1573, %v1661
    %1663 = vmatmul.bf16.gmra.mxu0 %v1147
    %v1664 = vpop.f32.mrf.mxu0
    %v1665 = vadd.f32 %v1576, %v1664
    %v1666 = vpop.f32.mrf.mxu0
    %v1667 = vadd.f32 %v1578, %v1666
    %1668 = vmatmul.bf16.gmra.mxu0 %v1149
    %v1669 = vpop.f32.mrf.mxu0
    %v1670 = vadd.f32 %v1581, %v1669
    %v1671 = vpop.f32.mrf.mxu0
    %v1672 = vadd.f32 %v1583, %v1671
    %1673 = vmatmul.bf16.gmra.mxu0 %v1151
    %v1674 = vpop.f32.mrf.mxu0
    %v1675 = vadd.f32 %v1586, %v1674
    %v1676 = vpop.f32.mrf.mxu0
    %v1677 = vadd.f32 %v1588, %v1676
    %1678 = vmatmul.bf16.gmra.mxu0 %v1153
    %v1679 = vpop.f32.mrf.mxu0
    %v1680 = vadd.f32 %v1591, %v1679
    %v1681 = vpop.f32.mrf.mxu0
    %v1682 = vadd.f32 %v1593, %v1681
    %1683 = vmatmul.bf16.gmra.mxu0 %v1155
    %v1684 = vpop.f32.mrf.mxu0
    %v1685 = vadd.f32 %v1596, %v1684
    %v1686 = vpop.f32.mrf.mxu0
    %v1687 = vadd.f32 %v1598, %v1686
    %1688 = vmatmul.bf16.gmra.mxu0 %v1157
    %v1689 = vpop.f32.mrf.mxu0
    %v1690 = vadd.f32 %v1601, %v1689
    %v1691 = vpop.f32.mrf.mxu0
    %v1692 = vadd.f32 %v1603, %v1691
    %1693 = vmatmul.bf16.gmra.mxu0 %v1159
    %v1694 = vpop.f32.mrf.mxu0
    %v1695 = vadd.f32 %v1606, %v1694
    %v1696 = vpop.f32.mrf.mxu0
    %v1697 = vadd.f32 %v1608, %v1696
    %1698 = vmatmul.bf16.gmra.mxu0 %v1161
    %v1699 = vpop.f32.mrf.mxu0
    %v1700 = vadd.f32 %v1611, %v1699
    %v1701 = vpop.f32.mrf.mxu0
    %v1702 = vadd.f32 %v1613, %v1701
    %1703 = vmatmul.bf16.gmra.mxu0 %v1163
    %v1704 = vpop.f32.mrf.mxu0
    %v1705 = vadd.f32 %v1616, %v1704
    %v1706 = vpop.f32.mrf.mxu0
    %v1707 = vadd.f32 %v1618, %v1706
    %1708 = vmatmul.bf16.gmra.mxu0 %v1165
    %v1709 = vpop.f32.mrf.mxu0
    %v1710 = vadd.f32 %v1621, %v1709
    %v1711 = vpop.f32.mrf.mxu0
    %v1712 = vadd.f32 %v1623, %v1711
    %1713 = vdwg.mxu0
    %v1714 = vadd.f32 %v1457, %v1459
    %v1715 = vadd.f32 %v1714, %v1462
    %v1716 = vadd.f32 %v1715, %v1464
    %v1717 = vadd.f32 %v1716, %v1467
    %v1718 = vadd.f32 %v1717, %v1469
    %v1719 = vadd.f32 %v1718, %v1472
    %v1720 = vadd.f32 %v1719, %v1474
    %v1721 = vadd.f32 %v1720, %v1477
    %v1722 = vadd.f32 %v1721, %v1479
    %v1723 = vadd.f32 %v1722, %v1482
    %v1724 = vadd.f32 %v1723, %v1484
    %v1725 = vadd.f32 %v1724, %v1487
    %v1726 = vadd.f32 %v1725, %v1489
    %v1727 = vadd.f32 %v1726, %v1492
    %v1728 = vadd.f32 %v1727, %v1494
    %v1729 = vadd.f32 %v1728, %v1497
    %v1730 = vadd.f32 %v1729, %v1499
    %v1731 = vadd.f32 %v1730, %v1502
    %v1732 = vadd.f32 %v1731, %v1504
    %v1733 = vadd.f32 %v1732, %v1507
    %v1734 = vadd.f32 %v1733, %v1509
    %v1735 = vadd.f32 %v1734, %v1512
    %v1736 = vadd.f32 %v1735, %v1514
    %v1737 = vadd.f32 %v1736, %v1517
    %v1738 = vadd.f32 %v1737, %v1519
    %v1739 = vadd.f32 %v1738, %v1522
    %v1740 = vadd.f32 %v1739, %v1524
    %v1741 = vadd.f32 %v1740, %v1527
    %v1742 = vadd.f32 %v1741, %v1529
    %v1743 = vadd.f32 %v1742, %v1532
    %v1744 = vadd.f32 %v1743, %v1534
    %v1745 = vrot.slane %v1744, 4
    %v1746 = vadd.f32 %v1744, %v1745
    %v1747 = vrot.slane %v1746, 2
    %v1748 = vadd.f32 %v1746, %v1747
    %v1749 = vrot.slane %v1748, 1
    %v1750 = vadd.f32 %v1748, %v1749
    %v1751 = vadd.f32 %v1635, %v1637
    %v1752 = vadd.f32 %v1751, %v1640
    %v1753 = vadd.f32 %v1752, %v1642
    %v1754 = vadd.f32 %v1753, %v1645
    %v1755 = vadd.f32 %v1754, %v1647
    %v1756 = vadd.f32 %v1755, %v1650
    %v1757 = vadd.f32 %v1756, %v1652
    %v1758 = vadd.f32 %v1757, %v1655
    %v1759 = vadd.f32 %v1758, %v1657
    %v1760 = vadd.f32 %v1759, %v1660
    %v1761 = vadd.f32 %v1760, %v1662
    %v1762 = vadd.f32 %v1761, %v1665
    %v1763 = vadd.f32 %v1762, %v1667
    %v1764 = vadd.f32 %v1763, %v1670
    %v1765 = vadd.f32 %v1764, %v1672
    %v1766 = vadd.f32 %v1765, %v1675
    %v1767 = vadd.f32 %v1766, %v1677
    %v1768 = vadd.f32 %v1767, %v1680
    %v1769 = vadd.f32 %v1768, %v1682
    %v1770 = vadd.f32 %v1769, %v1685
    %v1771 = vadd.f32 %v1770, %v1687
    %v1772 = vadd.f32 %v1771, %v1690
    %v1773 = vadd.f32 %v1772, %v1692
    %v1774 = vadd.f32 %v1773, %v1695
    %v1775 = vadd.f32 %v1774, %v1697
    %v1776 = vadd.f32 %v1775, %v1700
    %v1777 = vadd.f32 %v1776, %v1702
    %v1778 = vadd.f32 %v1777, %v1705
    %v1779 = vadd.f32 %v1778, %v1707
    %v1780 = vadd.f32 %v1779, %v1710
    %v1781 = vadd.f32 %v1780, %v1712
    %v1782 = vrot.slane %v1781, 4
    %v1783 = vadd.f32 %v1781, %v1782
    %v1784 = vrot.slane %v1783, 2
    %v1785 = vadd.f32 %v1783, %v1784
    %v1786 = vrot.slane %v1785, 1
    %v1787 = vadd.f32 %v1785, %v1786
    %v1788 = vmul.f32 %v1750, 0.00390625
    %v1789 = vmul.f32 %v1787, 0.00390625
    %v1790 = vmul.f32 %v1457, %v1457
    %v1791 = vmul.f32 %v1635, %v1635
    %v1792 = vmul.f32 %v1459, %v1459
    %v1793 = vmul.f32 %v1637, %v1637
    %v1794 = vmul.f32 %v1462, %v1462
    %v1795 = vmul.f32 %v1640, %v1640
    %v1796 = vmul.f32 %v1464, %v1464
    %v1797 = vmul.f32 %v1642, %v1642
    %v1798 = vmul.f32 %v1467, %v1467
    %v1799 = vmul.f32 %v1645, %v1645
    %v1800 = vmul.f32 %v1469, %v1469
    %v1801 = vmul.f32 %v1647, %v1647
    %v1802 = vmul.f32 %v1472, %v1472
    %v1803 = vmul.f32 %v1650, %v1650
    %v1804 = vmul.f32 %v1474, %v1474
    %v1805 = vmul.f32 %v1652, %v1652
    %v1806 = vmul.f32 %v1477, %v1477
    %v1807 = vmul.f32 %v1655, %v1655
    %v1808 = vmul.f32 %v1479, %v1479
    %v1809 = vmul.f32 %v1657, %v1657
    %v1810 = vmul.f32 %v1482, %v1482
    %v1811 = vmul.f32 %v1660, %v1660
    %v1812 = vmul.f32 %v1484, %v1484
    %v1813 = vmul.f32 %v1662, %v1662
    %v1814 = vmul.f32 %v1487, %v1487
    %v1815 = vmul.f32 %v1665, %v1665
    %v1816 = vmul.f32 %v1489, %v1489
    %v1817 = vmul.f32 %v1667, %v1667
    %v1818 = vmul.f32 %v1492, %v1492
    %v1819 = vmul.f32 %v1670, %v1670
    %v1820 = vmul.f32 %v1494, %v1494
    %v1821 = vmul.f32 %v1672, %v1672
    %v1822 = vmul.f32 %v1497, %v1497
    %v1823 = vmul.f32 %v1675, %v1675
    %v1824 = vmul.f32 %v1499, %v1499
    %v1825 = vmul.f32 %v1677, %v1677
    %v1826 = vmul.f32 %v1502, %v1502
    %v1827 = vmul.f32 %v1680, %v1680
    %v1828 = vmul.f32 %v1504, %v1504
    %v1829 = vmul.f32 %v1682, %v1682
    %v1830 = vmul.f32 %v1507, %v1507
    %v1831 = vmul.f32 %v1685, %v1685
    %v1832 = vmul.f32 %v1509, %v1509
    %v1833 = vmul.f32 %v1687, %v1687
    %v1834 = vmul.f32 %v1512, %v1512
    %v1835 = vmul.f32 %v1690, %v1690
    %v1836 = vmul.f32 %v1514, %v1514
    %v1837 = vmul.f32 %v1692, %v1692
    %v1838 = vmul.f32 %v1517, %v1517
    %v1839 = vmul.f32 %v1695, %v1695
    %v1840 = vmul.f32 %v1519, %v1519
    %v1841 = vmul.f32 %v1697, %v1697
    %v1842 = vmul.f32 %v1522, %v1522
    %v1843 = vmul.f32 %v1700, %v1700
    %v1844 = vmul.f32 %v1524, %v1524
    %v1845 = vmul.f32 %v1702, %v1702
    %v1846 = vmul.f32 %v1527, %v1527
    %v1847 = vmul.f32 %v1705, %v1705
    %v1848 = vmul.f32 %v1529, %v1529
    %v1849 = vmul.f32 %v1707, %v1707
    %v1850 = vmul.f32 %v1532, %v1532
    %v1851 = vmul.f32 %v1710, %v1710
    %v1852 = vmul.f32 %v1534, %v1534
    %v1853 = vmul.f32 %v1712, %v1712
    %v1854 = vadd.f32 %v1790, %v1792
    %v1855 = vadd.f32 %v1854, %v1794
    %v1856 = vadd.f32 %v1855, %v1796
    %v1857 = vadd.f32 %v1856, %v1798
    %v1858 = vadd.f32 %v1857, %v1800
    %v1859 = vadd.f32 %v1858, %v1802
    %v1860 = vadd.f32 %v1859, %v1804
    %v1861 = vadd.f32 %v1860, %v1806
    %v1862 = vadd.f32 %v1861, %v1808
    %v1863 = vadd.f32 %v1862, %v1810
    %v1864 = vadd.f32 %v1863, %v1812
    %v1865 = vadd.f32 %v1864, %v1814
    %v1866 = vadd.f32 %v1865, %v1816
    %v1867 = vadd.f32 %v1866, %v1818
    %v1868 = vadd.f32 %v1867, %v1820
    %v1869 = vadd.f32 %v1868, %v1822
    %v1870 = vadd.f32 %v1869, %v1824
    %v1871 = vadd.f32 %v1870, %v1826
    %v1872 = vadd.f32 %v1871, %v1828
    %v1873 = vadd.f32 %v1872, %v1830
    %v1874 = vadd.f32 %v1873, %v1832
    %v1875 = vadd.f32 %v1874, %v1834
    %v1876 = vadd.f32 %v1875, %v1836
    %v1877 = vadd.f32 %v1876, %v1838
    %v1878 = vadd.f32 %v1877, %v1840
    %v1879 = vadd.f32 %v1878, %v1842
    %v1880 = vadd.f32 %v1879, %v1844
    %v1881 = vadd.f32 %v1880, %v1846
    %v1882 = vadd.f32 %v1881, %v1848
    %v1883 = vadd.f32 %v1882, %v1850
    %v1884 = vadd.f32 %v1883, %v1852
    %v1885 = vrot.slane %v1884, 4
    %v1886 = vadd.f32 %v1884, %v1885
    %v1887 = vrot.slane %v1886, 2
    %v1888 = vadd.f32 %v1886, %v1887
    %v1889 = vrot.slane %v1888, 1
    %v1890 = vadd.f32 %v1888, %v1889
    %v1891 = vadd.f32 %v1791, %v1793
    %v1892 = vadd.f32 %v1891, %v1795
    %v1893 = vadd.f32 %v1892, %v1797
    %v1894 = vadd.f32 %v1893, %v1799
    %v1895 = vadd.f32 %v1894, %v1801
    %v1896 = vadd.f32 %v1895, %v1803
    %v1897 = vadd.f32 %v1896, %v1805
    %v1898 = vadd.f32 %v1897, %v1807
    %v1899 = vadd.f32 %v1898, %v1809
    %v1900 = vadd.f32 %v1899, %v1811
    %v1901 = vadd.f32 %v1900, %v1813
    %v1902 = vadd.f32 %v1901, %v1815
    %v1903 = vadd.f32 %v1902, %v1817
    %v1904 = vadd.f32 %v1903, %v1819
    %v1905 = vadd.f32 %v1904, %v1821
    %v1906 = vadd.f32 %v1905, %v1823
    %v1907 = vadd.f32 %v1906, %v1825
    %v1908 = vadd.f32 %v1907, %v1827
    %v1909 = vadd.f32 %v1908, %v1829
    %v1910 = vadd.f32 %v1909, %v1831
    %v1911 = vadd.f32 %v1910, %v1833
    %v1912 = vadd.f32 %v1911, %v1835
    %v1913 = vadd.f32 %v1912, %v1837
    %v1914 = vadd.f32 %v1913, %v1839
    %v1915 = vadd.f32 %v1914, %v1841
    %v1916 = vadd.f32 %v1915, %v1843
    %v1917 = vadd.f32 %v1916, %v1845
    %v1918 = vadd.f32 %v1917, %v1847
    %v1919 = vadd.f32 %v1918, %v1849
    %v1920 = vadd.f32 %v1919, %v1851
    %v1921 = vadd.f32 %v1920, %v1853
    %v1922 = vrot.slane %v1921, 4
    %v1923 = vadd.f32 %v1921, %v1922
    %v1924 = vrot.slane %v1923, 2
    %v1925 = vadd.f32 %v1923, %v1924
    %v1926 = vrot.slane %v1925, 1
    %v1927 = vadd.f32 %v1925, %v1926
    %v1928 = vmul.f32 %v1890, 0.00390625
    %v1929 = vmul.f32 %v1927, 0.00390625
    %v1930 = vmul.f32 %v1788, %v1788
    %v1931 = vmul.f32 %v1789, %v1789
    %v1932 = vsub.f32 %v1928, %v1930
    %v1933 = vsub.f32 %v1929, %v1931
    %v1934 = vmax.f32 %v1932, 0.0
    %v1935 = vmax.f32 %v1933, 0.0
    %v1936 = vld [vmem:[%s5] sm:$0x3]
    %v1937 = vadd.f32 %v1934, 1e-05
    %v1938 = vadd.f32 %v1935, 1e-05
    %v1939 = vrsqrt.pop %v1937
    %v1940 = vmul.f32 %v1939, %v1937
    %v1941 = vmul.f32 %v1940, %v1939
    %v1942 = vmul.f32 0.5, %v1941
    %v1943 = vsub.f32 1.5, %v1942
    %v1944 = vmul.f32 %v1939, %v1943
    %vm1945 = vweird.f32 %v1937
    %vm1946 = vweird.f32 %v1939
    %vm1947 = vmor %vm1945, %vm1946
    %v1948 = vsel %vm1947, %v1939, %v1944
    %v1949 = vrsqrt.pop %v1938
    %v1950 = vmul.f32 %v1949, %v1938
    %v1951 = vmul.f32 %v1950, %v1949
    %v1952 = vmul.f32 0.5, %v1951
    %v1953 = vsub.f32 1.5, %v1952
    %v1954 = vmul.f32 %v1949, %v1953
    %vm1955 = vweird.f32 %v1938
    %vm1956 = vweird.f32 %v1949
    %vm1957 = vmor %vm1955, %vm1956
    %v1958 = vsel %vm1957, %v1949, %v1954
    %v1961 = vrot.slane %v1958, 7
    %v1962 = vsel %vm919, %v1948, %v1961
    %v1964 = vmul.f32 %v1936, %v1962
    %v1965 = vld [vmem:[%s6] sm:$0x3]
    %v1967 = vperm.slane %v1964, 0
    %v1968 = vperm.slane %v1964, 1
    %v1971 = vmul.f32 %v1788, %v1967
    %v1972 = vmul.f32 %v1789, %v1968
    %v1975 = vrot.slane %v1972, 7
    %v1976 = vsel %vm919, %v1971, %v1975
    %v1978 = vsub.f32 %v1965, %v1976
    %v1979 = vmul.f32 %v1457, %v1967
    %v1980 = vmul.f32 %v1635, %v1968
    %v1981 = vmul.f32 %v1459, %v1967
    %v1982 = vmul.f32 %v1637, %v1968
    %v1983 = vmul.f32 %v1462, %v1967
    %v1984 = vmul.f32 %v1640, %v1968
    %v1985 = vmul.f32 %v1464, %v1967
    %v1986 = vmul.f32 %v1642, %v1968
    %v1987 = vmul.f32 %v1467, %v1967
    %v1988 = vmul.f32 %v1645, %v1968
    %v1989 = vmul.f32 %v1469, %v1967
    %v1990 = vmul.f32 %v1647, %v1968
    %v1991 = vmul.f32 %v1472, %v1967
    %v1992 = vmul.f32 %v1650, %v1968
    %v1993 = vmul.f32 %v1474, %v1967
    %v1994 = vmul.f32 %v1652, %v1968
    %v1995 = vmul.f32 %v1477, %v1967
    %v1996 = vmul.f32 %v1655, %v1968
    %v1997 = vmul.f32 %v1479, %v1967
    %v1998 = vmul.f32 %v1657, %v1968
    %v1999 = vmul.f32 %v1482, %v1967
    %v2000 = vmul.f32 %v1660, %v1968
    %v2001 = vmul.f32 %v1484, %v1967
    %v2002 = vmul.f32 %v1662, %v1968
    %v2003 = vmul.f32 %v1487, %v1967
    %v2004 = vmul.f32 %v1665, %v1968
    %v2005 = vmul.f32 %v1489, %v1967
    %v2006 = vmul.f32 %v1667, %v1968
    %v2007 = vmul.f32 %v1492, %v1967
    %v2008 = vmul.f32 %v1670, %v1968
    %v2009 = vmul.f32 %v1494, %v1967
    %v2010 = vmul.f32 %v1672, %v1968
    %v2011 = vmul.f32 %v1497, %v1967
    %v2012 = vmul.f32 %v1675, %v1968
    %v2013 = vmul.f32 %v1499, %v1967
    %v2014 = vmul.f32 %v1677, %v1968
    %v2015 = vmul.f32 %v1502, %v1967
    %v2016 = vmul.f32 %v1680, %v1968
    %v2017 = vmul.f32 %v1504, %v1967
    %v2018 = vmul.f32 %v1682, %v1968
    %v2019 = vmul.f32 %v1507, %v1967
    %v2020 = vmul.f32 %v1685, %v1968
    %v2021 = vmul.f32 %v1509, %v1967
    %v2022 = vmul.f32 %v1687, %v1968
    %v2023 = vmul.f32 %v1512, %v1967
    %v2024 = vmul.f32 %v1690, %v1968
    %v2025 = vmul.f32 %v1514, %v1967
    %v2026 = vmul.f32 %v1692, %v1968
    %v2027 = vmul.f32 %v1517, %v1967
    %v2028 = vmul.f32 %v1695, %v1968
    %v2029 = vmul.f32 %v1519, %v1967
    %v2030 = vmul.f32 %v1697, %v1968
    %v2031 = vmul.f32 %v1522, %v1967
    %v2032 = vmul.f32 %v1700, %v1968
    %v2033 = vmul.f32 %v1524, %v1967
    %v2034 = vmul.f32 %v1702, %v1968
    %v2035 = vmul.f32 %v1527, %v1967
    %v2036 = vmul.f32 %v1705, %v1968
    %v2037 = vmul.f32 %v1529, %v1967
    %v2038 = vmul.f32 %v1707, %v1968
    %v2039 = vmul.f32 %v1532, %v1967
    %v2040 = vmul.f32 %v1710, %v1968
    %v2041 = vmul.f32 %v1534, %v1967
    %v2042 = vmul.f32 %v1712, %v1968
    %v2043 = vadd.f32 %v27, %v1979
    %v2044 = vadd.f32 %v28, %v1980
    %v2045 = vadd.f32 %v29, %v1981
    %v2046 = vadd.f32 %v30, %v1982
    %v2047 = vadd.f32 %v31, %v1983
    %v2048 = vadd.f32 %v32, %v1984
    %v2049 = vadd.f32 %v33, %v1985
    %v2050 = vadd.f32 %v34, %v1986
    %v2051 = vadd.f32 %v35, %v1987
    %v2052 = vadd.f32 %v36, %v1988
    %v2053 = vadd.f32 %v37, %v1989
    %v2054 = vadd.f32 %v38, %v1990
    %v2055 = vadd.f32 %v39, %v1991
    %v2056 = vadd.f32 %v40, %v1992
    %v2057 = vadd.f32 %v41, %v1993
    %v2058 = vadd.f32 %v42, %v1994
    %v2059 = vadd.f32 %v43, %v1995
    %v2060 = vadd.f32 %v44, %v1996
    %v2061 = vadd.f32 %v45, %v1997
    %v2062 = vadd.f32 %v46, %v1998
    %v2063 = vadd.f32 %v47, %v1999
    %v2064 = vadd.f32 %v48, %v2000
    %v2065 = vadd.f32 %v49, %v2001
    %v2066 = vadd.f32 %v50, %v2002
    %v2067 = vadd.f32 %v51, %v2003
    %v2068 = vadd.f32 %v52, %v2004
    %v2069 = vadd.f32 %v53, %v2005
    %v2070 = vadd.f32 %v54, %v2006
    %v2071 = vadd.f32 %v55, %v2007
    %v2072 = vadd.f32 %v56, %v2008
    %v2073 = vadd.f32 %v57, %v2009
    %v2074 = vadd.f32 %v58, %v2010
    %v2075 = vadd.f32 %v59, %v2011
    %v2076 = vadd.f32 %v60, %v2012
    %v2077 = vadd.f32 %v61, %v2013
    %v2078 = vadd.f32 %v62, %v2014
    %v2079 = vadd.f32 %v63, %v2015
    %v2080 = vadd.f32 %v64, %v2016
    %v2081 = vadd.f32 %v65, %v2017
    %v2082 = vadd.f32 %v66, %v2018
    %v2083 = vadd.f32 %v67, %v2019
    %v2084 = vadd.f32 %v68, %v2020
    %v2085 = vadd.f32 %v69, %v2021
    %v2086 = vadd.f32 %v70, %v2022
    %v2087 = vadd.f32 %v71, %v2023
    %v2088 = vadd.f32 %v72, %v2024
    %v2089 = vadd.f32 %v73, %v2025
    %v2090 = vadd.f32 %v74, %v2026
    %v2091 = vadd.f32 %v75, %v2027
    %v2092 = vadd.f32 %v76, %v2028
    %v2093 = vadd.f32 %v77, %v2029
    %v2094 = vadd.f32 %v78, %v2030
    %v2095 = vadd.f32 %v79, %v2031
    %v2096 = vadd.f32 %v80, %v2032
    %v2097 = vadd.f32 %v81, %v2033
    %v2098 = vadd.f32 %v82, %v2034
    %v2099 = vadd.f32 %v83, %v2035
    %v2100 = vadd.f32 %v84, %v2036
    %v2101 = vadd.f32 %v85, %v2037
    %v2102 = vadd.f32 %v86, %v2038
    %v2103 = vadd.f32 %v87, %v2039
    %v2104 = vadd.f32 %v88, %v2040
    %v2105 = vadd.f32 %v89, %v2041
    %v2106 = vadd.f32 %v90, %v2042
    %v2108 = vperm.slane %v1978, 0
    %v2109 = vperm.slane %v1978, 1
    %v2112 = vadd.f32 %v2043, %v2108
    %v2113 = vadd.f32 %v2044, %v2109
    %v2114 = vadd.f32 %v2045, %v2108
    %v2115 = vadd.f32 %v2046, %v2109
    %v2116 = vadd.f32 %v2047, %v2108
    %v2117 = vadd.f32 %v2048, %v2109
    %v2118 = vadd.f32 %v2049, %v2108
    %v2119 = vadd.f32 %v2050, %v2109
    %v2120 = vadd.f32 %v2051, %v2108
    %v2121 = vadd.f32 %v2052, %v2109
    %v2122 = vadd.f32 %v2053, %v2108
    %v2123 = vadd.f32 %v2054, %v2109
    %v2124 = vadd.f32 %v2055, %v2108
    %v2125 = vadd.f32 %v2056, %v2109
    %v2126 = vadd.f32 %v2057, %v2108
    %v2127 = vadd.f32 %v2058, %v2109
    %v2128 = vadd.f32 %v2059, %v2108
    %v2129 = vadd.f32 %v2060, %v2109
    %v2130 = vadd.f32 %v2061, %v2108
    %v2131 = vadd.f32 %v2062, %v2109
    %v2132 = vadd.f32 %v2063, %v2108
    %v2133 = vadd.f32 %v2064, %v2109
    %v2134 = vadd.f32 %v2065, %v2108
    %v2135 = vadd.f32 %v2066, %v2109
    %v2136 = vadd.f32 %v2067, %v2108
    %v2137 = vadd.f32 %v2068, %v2109
    %v2138 = vadd.f32 %v2069, %v2108
    %v2139 = vadd.f32 %v2070, %v2109
    %v2140 = vadd.f32 %v2071, %v2108
    %v2141 = vadd.f32 %v2072, %v2109
    %v2142 = vadd.f32 %v2073, %v2108
    %v2143 = vadd.f32 %v2074, %v2109
    %v2144 = vadd.f32 %v2075, %v2108
    %v2145 = vadd.f32 %v2076, %v2109
    %v2146 = vadd.f32 %v2077, %v2108
    %v2147 = vadd.f32 %v2078, %v2109
    %v2148 = vadd.f32 %v2079, %v2108
    %v2149 = vadd.f32 %v2080, %v2109
    %v2150 = vadd.f32 %v2081, %v2108
    %v2151 = vadd.f32 %v2082, %v2109
    %v2152 = vadd.f32 %v2083, %v2108
    %v2153 = vadd.f32 %v2084, %v2109
    %v2154 = vadd.f32 %v2085, %v2108
    %v2155 = vadd.f32 %v2086, %v2109
    %v2156 = vadd.f32 %v2087, %v2108
    %v2157 = vadd.f32 %v2088, %v2109
    %v2158 = vadd.f32 %v2089, %v2108
    %v2159 = vadd.f32 %v2090, %v2109
    %v2160 = vadd.f32 %v2091, %v2108
    %v2161 = vadd.f32 %v2092, %v2109
    %v2162 = vadd.f32 %v2093, %v2108
    %v2163 = vadd.f32 %v2094, %v2109
    %v2164 = vadd.f32 %v2095, %v2108
    %v2165 = vadd.f32 %v2096, %v2109
    %v2166 = vadd.f32 %v2097, %v2108
    %v2167 = vadd.f32 %v2098, %v2109
    %v2168 = vadd.f32 %v2099, %v2108
    %v2169 = vadd.f32 %v2100, %v2109
    %v2170 = vadd.f32 %v2101, %v2108
    %v2171 = vadd.f32 %v2102, %v2109
    %v2172 = vadd.f32 %v2103, %v2108
    %v2173 = vadd.f32 %v2104, %v2109
    %v2174 = vadd.f32 %v2105, %v2108
    %v2175 = vadd.f32 %v2106, %v2109
    %v2176 = vmax.f32 %v2112, 0.0
    %v2177 = vmax.f32 %v2113, 0.0
    %v2178 = vmax.f32 %v2114, 0.0
    %v2179 = vmax.f32 %v2115, 0.0
    %v2180 = vmax.f32 %v2116, 0.0
    %v2181 = vmax.f32 %v2117, 0.0
    %v2182 = vmax.f32 %v2118, 0.0
    %v2183 = vmax.f32 %v2119, 0.0
    %v2184 = vmax.f32 %v2120, 0.0
    %v2185 = vmax.f32 %v2121, 0.0
    %v2186 = vmax.f32 %v2122, 0.0
    %v2187 = vmax.f32 %v2123, 0.0
    %v2188 = vmax.f32 %v2124, 0.0
    %v2189 = vmax.f32 %v2125, 0.0
    %v2190 = vmax.f32 %v2126, 0.0
    %v2191 = vmax.f32 %v2127, 0.0
    %v2192 = vmax.f32 %v2128, 0.0
    %v2193 = vmax.f32 %v2129, 0.0
    %v2194 = vmax.f32 %v2130, 0.0
    %v2195 = vmax.f32 %v2131, 0.0
    %v2196 = vmax.f32 %v2132, 0.0
    %v2197 = vmax.f32 %v2133, 0.0
    %v2198 = vmax.f32 %v2134, 0.0
    %v2199 = vmax.f32 %v2135, 0.0
    %v2200 = vmax.f32 %v2136, 0.0
    %v2201 = vmax.f32 %v2137, 0.0
    %v2202 = vmax.f32 %v2138, 0.0
    %v2203 = vmax.f32 %v2139, 0.0
    %v2204 = vmax.f32 %v2140, 0.0
    %v2205 = vmax.f32 %v2141, 0.0
    %v2206 = vmax.f32 %v2142, 0.0
    %v2207 = vmax.f32 %v2143, 0.0
    %v2208 = vmax.f32 %v2144, 0.0
    %v2209 = vmax.f32 %v2145, 0.0
    %v2210 = vmax.f32 %v2146, 0.0
    %v2211 = vmax.f32 %v2147, 0.0
    %v2212 = vmax.f32 %v2148, 0.0
    %v2213 = vmax.f32 %v2149, 0.0
    %v2214 = vmax.f32 %v2150, 0.0
    %v2215 = vmax.f32 %v2151, 0.0
    %v2216 = vmax.f32 %v2152, 0.0
    %v2217 = vmax.f32 %v2153, 0.0
    %v2218 = vmax.f32 %v2154, 0.0
    %v2219 = vmax.f32 %v2155, 0.0
    %v2220 = vmax.f32 %v2156, 0.0
    %v2221 = vmax.f32 %v2157, 0.0
    %v2222 = vmax.f32 %v2158, 0.0
    %v2223 = vmax.f32 %v2159, 0.0
    %v2224 = vmax.f32 %v2160, 0.0
    %v2225 = vmax.f32 %v2161, 0.0
    %v2226 = vmax.f32 %v2162, 0.0
    %v2227 = vmax.f32 %v2163, 0.0
    %v2228 = vmax.f32 %v2164, 0.0
    %v2229 = vmax.f32 %v2165, 0.0
    %v2230 = vmax.f32 %v2166, 0.0
    %v2231 = vmax.f32 %v2167, 0.0
    %v2232 = vmax.f32 %v2168, 0.0
    %v2233 = vmax.f32 %v2169, 0.0
    %v2234 = vmax.f32 %v2170, 0.0
    %v2235 = vmax.f32 %v2171, 0.0
    %v2236 = vmax.f32 %v2172, 0.0
    %v2237 = vmax.f32 %v2173, 0.0
    %v2238 = vmax.f32 %v2174, 0.0
    %v2239 = vmax.f32 %v2175, 0.0
    %2240 = vst [vmem:[#allocation2] sm:$0xff] %v2176
    %2241 = vst [vmem:[#allocation2 + $0x8] sm:$0xff] %v2177
    %2242 = vst [vmem:[#allocation2 + $0x10] sm:$0xff] %v2178
    %2243 = vst [vmem:[#allocation2 + $0x18] sm:$0xff] %v2179
    %2244 = vst [vmem:[#allocation2 + $0x20] sm:$0xff] %v2180
    %2245 = vst [vmem:[#allocation2 + $0x28] sm:$0xff] %v2181
    %2246 = vst [vmem:[#allocation2 + $0x30] sm:$0xff] %v2182
    %2247 = vst [vmem:[#allocation2 + $0x38] sm:$0xff] %v2183
    %2248 = vst [vmem:[#allocation2 + $0x40] sm:$0xff] %v2184
    %2249 = vst [vmem:[#allocation2 + $0x48] sm:$0xff] %v2185
    %2250 = vst [vmem:[#allocation2 + $0x50] sm:$0xff] %v2186
    %2251 = vst [vmem:[#allocation2 + $0x58] sm:$0xff] %v2187
    %2252 = vst [vmem:[#allocation2 + $0x60] sm:$0xff] %v2188
    %2253 = vst [vmem:[#allocation2 + $0x68] sm:$0xff] %v2189
    %2254 = vst [vmem:[#allocation2 + $0x70] sm:$0xff] %v2190
    %2255 = vst [vmem:[#allocation2 + $0x78] sm:$0xff] %v2191
    %2256 = vst [vmem:[#allocation2 + $0x80] sm:$0xff] %v2192
    %2257 = vst [vmem:[#allocation2 + $0x88] sm:$0xff] %v2193
    %2258 = vst [vmem:[#allocation2 + $0x90] sm:$0xff] %v2194
    %2259 = vst [vmem:[#allocation2 + $0x98] sm:$0xff] %v2195
    %2260 = vst [vmem:[#allocation2 + $0xa0] sm:$0xff] %v2196
    %2261 = vst [vmem:[#allocation2 + $0xa8] sm:$0xff] %v2197
    %2262 = vst [vmem:[#allocation2 + $0xb0] sm:$0xff] %v2198
    %2263 = vst [vmem:[#allocation2 + $0xb8] sm:$0xff] %v2199
    %2264 = vst [vmem:[#allocation2 + $0xc0] sm:$0xff] %v2200
    %2265 = vst [vmem:[#allocation2 + $0xc8] sm:$0xff] %v2201
    %2266 = vst [vmem:[#allocation2 + $0xd0] sm:$0xff] %v2202
    %2267 = vst [vmem:[#allocation2 + $0xd8] sm:$0xff] %v2203
    %2268 = vst [vmem:[#allocation2 + $0xe0] sm:$0xff] %v2204
    %2269 = vst [vmem:[#allocation2 + $0xe8] sm:$0xff] %v2205
    %2270 = vst [vmem:[#allocation2 + $0xf0] sm:$0xff] %v2206
    %2271 = vst [vmem:[#allocation2 + $0xf8] sm:$0xff] %v2207
    %2272 = vst [vmem:[#allocation2 + $0x100] sm:$0xff] %v2208
    %2273 = vst [vmem:[#allocation2 + $0x108] sm:$0xff] %v2209
    %2274 = vst [vmem:[#allocation2 + $0x110] sm:$0xff] %v2210
    %2275 = vst [vmem:[#allocation2 + $0x118] sm:$0xff] %v2211
    %2276 = vst [vmem:[#allocation2 + $0x120] sm:$0xff] %v2212
    %2277 = vst [vmem:[#allocation2 + $0x128] sm:$0xff] %v2213
    %2278 = vst [vmem:[#allocation2 + $0x130] sm:$0xff] %v2214
    %2279 = vst [vmem:[#allocation2 + $0x138] sm:$0xff] %v2215
    %2280 = vst [vmem:[#allocation2 + $0x140] sm:$0xff] %v2216
    %2281 = vst [vmem:[#allocation2 + $0x148] sm:$0xff] %v2217
    %2282 = vst [vmem:[#allocation2 + $0x150] sm:$0xff] %v2218
    %2283 = vst [vmem:[#allocation2 + $0x158] sm:$0xff] %v2219
    %2284 = vst [vmem:[#allocation2 + $0x160] sm:$0xff] %v2220
    %2285 = vst [vmem:[#allocation2 + $0x168] sm:$0xff] %v2221
    %2286 = vst [vmem:[#allocation2 + $0x170] sm:$0xff] %v2222
    %2287 = vst [vmem:[#allocation2 + $0x178] sm:$0xff] %v2223
    %2288 = vst [vmem:[#allocation2 + $0x180] sm:$0xff] %v2224
    %2289 = vst [vmem:[#allocation2 + $0x188] sm:$0xff] %v2225
    %2290 = vst [vmem:[#allocation2 + $0x190] sm:$0xff] %v2226
    %2291 = vst [vmem:[#allocation2 + $0x198] sm:$0xff] %v2227
    %2292 = vst [vmem:[#allocation2 + $0x1a0] sm:$0xff] %v2228
    %2293 = vst [vmem:[#allocation2 + $0x1a8] sm:$0xff] %v2229
    %2294 = vst [vmem:[#allocation2 + $0x1b0] sm:$0xff] %v2230
    %2295 = vst [vmem:[#allocation2 + $0x1b8] sm:$0xff] %v2231
    %2296 = vst [vmem:[#allocation2 + $0x1c0] sm:$0xff] %v2232
    %2297 = vst [vmem:[#allocation2 + $0x1c8] sm:$0xff] %v2233
    %2298 = vst [vmem:[#allocation2 + $0x1d0] sm:$0xff] %v2234
    %2299 = vst [vmem:[#allocation2 + $0x1d8] sm:$0xff] %v2235
    %2300 = vst [vmem:[#allocation2 + $0x1e0] sm:$0xff] %v2236
    %2301 = vst [vmem:[#allocation2 + $0x1e8] sm:$0xff] %v2237
    %2302 = vst [vmem:[#allocation2 + $0x1f0] sm:$0xff] %v2238
    %2303 = vst [vmem:[#allocation2 + $0x1f8] sm:$0xff] %v2239
    // Predicated region
    $region30: #{fc_res_block.1} parent=1 // pred_check
      _
    $region31: #{fc_res_block.1} parent=1 // pred_check_branch
      %2305 = sbr.rel (0) target = $region33
    $region32: #{fc_res_block.1} parent=1 // pred_region
      %2307 = vsyncadd [#allocation3], 0
      %s2308 = sshll.u32 [#allocation2], 4
      %s2309 = int_to_ptr.vmem [resolvable:$true] %s2308
      %s2310 = sshll.u32 %s7, 4
      %s2311 = int_to_ptr.hbm [resolvable:$true] %s2310
      %2316 = dma.vmem_to_hbm [thread:$0]  %s2309, 8192, %s2311, [#allocation3], 256, 256, 16
    $region33: #{fc_res_block.1} parent=1 // pred_fallthru
      _
    // Predicated region
    $region34: #{fc_res_block.1} parent=1 // pred_check
      _
    $region35: #{fc_res_block.1} parent=1 // pred_check_branch
      %2318 = sbr.rel (0) target = $region37
    $region36: #{fc_res_block.1} parent=1 // pred_region
      %2320 = dma.done [#allocation3], 8192
    $region37: #{fc_res_block.1} parent=1 // pred_fallthru
      _
    %2321 = vsyncpa [#allocation3], 1

</llo_original>
